<compile_context>
chip_gen: v6e
topology: v6e:2x2x1
jax: 0.10.0
libtpu: 0.0.40
codegen_flags: <defaults>
</compile_context>

<pallas_src>
import jax
import jax.numpy as jnp
from jax.experimental import pallas as pl
from jax.experimental.pallas import tpu as pltpu

NEG_SLOPE = 0.01  # nn.LeakyReLU default

# VMEM sizing (bytes): budget used to cap the batch tile, and the scoped limit we
# request from Mosaic.  40 MiB leaves headroom on v7x's 64 MiB physical VMEM and
# overrides v5e's 16 MiB default scoped limit.
_TILE_VMEM_BUDGET = 24 * 1024 * 1024
_VMEM_LIMIT_BYTES = 40 * 1024 * 1024


def _leaky_relu(x):
    return jnp.where(x >= 0, x, NEG_SLOPE * x)


def _round_up(x, m):
    return ((x + m - 1) // m) * m


def _choose_tb(B, tb_req, n, d, emb_itemsize):
    """Pick the batch tile: as large as the VMEM budget allows, sublane-aligned,
    and keeping >= 2 grid steps (for v7x's two TensorCores) when B is big enough."""
    nd = n * d
    per_row = (2 * nd * emb_itemsize      # items block, double-buffered
               + 2 * nd * emb_itemsize    # output block, double-buffered
               + 2 * d * emb_itemsize     # user block, double-buffered
               + 8 * nd * 4)              # f32 intermediates (ui, h, v, out) + slack
    cap = max(8, _TILE_VMEM_BUDGET // per_row)
    tb = min(tb_req, cap)
    if B <= 8:
        return B                          # tiny batch: one exact tile
    tb = max(8, (tb // 8) * 8)            # multiple of 8 sublanes
    if tb >= B:                           # keep >= 2 grid steps for megacore sharding
        tb = _round_up(pl.cdiv(B, 2), 8)
    return tb


def att0_18_kernel(u_ref, it_ref, w1_ref, b1_ref, w2_ref, wv_ref, bv_ref,
                   wmp_ref, bmp_ref, out_ref):
    TB, N, D = it_ref.shape

    u = u_ref[...].astype(jnp.float32)          # (TB, D)
    items = it_ref[...].astype(jnp.float32)     # (TB, N, D)
    ui3 = u[:, None, :] * items                 # (TB, N, D)

    # ---- hidden / value projections: two MXU dots on (TB*N, D) rows ----
    ui2 = ui3.reshape(TB * N, D)
    hidden = _leaky_relu(
        jnp.dot(ui2, w1_ref[...], preferred_element_type=jnp.float32) + b1_ref[...])
    value = jnp.dot(ui2, wv_ref[...],
                    preferred_element_type=jnp.float32) + bv_ref[...]
    hidden = hidden.reshape(TB, N, D)
    value = value.reshape(TB, N, D)

    # ---- additive-attention scores: VPU multiply + lane reduction ----
    # (b2 omitted: adding a constant to every score does not change the softmax)
    scores = jnp.sum(hidden * w2_ref[...], axis=-1, keepdims=True)   # (TB, N, 1)
    scores = scores - jnp.max(scores, axis=1, keepdims=True)
    exp_s = jnp.exp(scores)
    denom = jnp.sum(exp_s, axis=1, keepdims=True)                    # (TB, 1, 1)
    alphas = exp_s * pl.reciprocal(denom, approx=True)               # (TB, N, 1)

    # ---- attentive pooling + message-passing linear ----
    pooled = jnp.sum(alphas * value, axis=1)                         # (TB, D)
    att = jnp.dot(pooled, wmp_ref[...],
                  preferred_element_type=jnp.float32) + bmp_ref[...]  # (TB, D)

    out3 = _leaky_relu(ui3 + att[:, None, :])                        # (TB, N, D)
    # TODO(synk): nn.Dropout omitted (eval-mode identity).
    # lane-dense store: last dim N*D is a multiple of 128 for N*D >= 128
    out_ref[...] = out3.reshape(TB, N * D).astype(out_ref.dtype)


def att0_18_forward(embeddings, params, *, tb=1024, buffers=2):
    """embeddings: (B, N+1, D); params: (w1,b1,w2,b2,wv,bv,wmp,bmp) with (in,out) weights.

    `tb` is the batch-tile sweep parameter (default 1024 ~= 1-2 MiB blocks, the
    measured HBM-roofline sweet spot).  `buffers` > 2 requests deeper pipelining on
    the streaming items/output blocks (only useful if DMA is still exposed)."""
    B, Np1, D = embeddings.shape
    N = Np1 - 1
    w1, b1, w2, b2, wv, bv, wmp, bmp = params
    del b2  # uniform shift before softmax -> no effect on the output

    # ---- wrapper-side prep (plain XLA ops, outside the kernel) ----
    u = embeddings[:, 0, :]                     # (B, D)
    items = embeddings[:, 1:, :]                # (B, N, D)
    w2row = w2.reshape(1, D)                    # (1, D)

    # batch tile: as big as VMEM allows, but keep >= 2 grid steps for v7x.
    TB = _choose_tb(B, tb, N, D, embeddings.dtype.itemsize)
    B_pad = pl.cdiv(B, TB) * TB
    if B_pad != B:
        pad = B_pad - B
        u = jnp.pad(u, ((0, pad), (0, 0)))
        items = jnp.pad(items, ((0, pad), (0, 0), (0, 0)))

    def spec(shape, imap, pipelined=False):
        if pipelined and buffers > 2:
            return pl.BlockSpec(shape, imap, pipeline_mode=pl.Buffered(buffers))
        return pl.BlockSpec(shape, imap)

    full = lambda shape: spec(shape, lambda b: (0,) * len(shape))

    out_flat = pl.pallas_call(
        att0_18_kernel,
        out_shape=jax.ShapeDtypeStruct((B_pad, N * D), embeddings.dtype),
        grid_spec=pltpu.PrefetchScalarGridSpec(
            num_scalar_prefetch=0,
            grid=(B_pad // TB,),
            in_specs=[
                spec((TB, D), lambda b: (b, 0)),                    # user rows
                spec((TB, N, D), lambda b: (b, 0, 0), True),        # item rows
                full((D, D)), full((1, D)),                         # W1, b1
                full((1, D)),                                       # w2 (as a row)
                full((D, D)), full((1, D)),                         # Wv, bv
                full((D, D)), full((1, D)),                         # Wmp, bmp
            ],
            out_specs=spec((TB, N * D), lambda b: (b, 0), True),
        ),
        compiler_params=pltpu.CompilerParams(
            dimension_semantics=("parallel",),
            vmem_limit_bytes=_VMEM_LIMIT_BYTES),
    )(u, items, w1, b1, w2row, wv, bv, wmp, bmp)

    return out_flat[:B].reshape(B, N, D)


def make_params(key, em_dim):
    ks = jax.random.split(key, 8)
    s = 0.1
    w1 = s * jax.random.normal(ks[0], (em_dim, em_dim), jnp.float32)
    b1 = s * jax.random.normal(ks[1], (1, em_dim), jnp.float32)
    w2 = s * jax.random.normal(ks[2], (em_dim, 1), jnp.float32)
    b2 = s * jax.random.normal(ks[3], (1, 1), jnp.float32)
    wv = s * jax.random.normal(ks[4], (em_dim, em_dim), jnp.float32)
    bv = s * jax.random.normal(ks[5], (1, em_dim), jnp.float32)
    wmp = s * jax.random.normal(ks[6], (em_dim, em_dim), jnp.float32)
    bmp = s * jax.random.normal(ks[7], (1, em_dim), jnp.float32)
    return (w1, b1, w2, b2, wv, bv, wmp, bmp)


def reference_forward(embeddings, params):
    # pure-JAX reference mirroring the PyTorch module (eval mode), b2 included.
    w1, b1, w2, b2, wv, bv, wmp, bmp = params
    u = embeddings[:, 0:1, :]
    items = embeddings[:, 1:, :]
    ui = u * items
    hidden = _leaky_relu(ui @ w1 + b1)
    scores = hidden @ w2 + b2
    alphas = jax.nn.softmax(scores, axis=-2)
    value = ui @ wv + bv
    att = jnp.sum(alphas * value, axis=-2)        # (B, D)
    att = att @ wmp + bmp
    return _leaky_relu(ui + att[:, None, :])


if __name__ == "__main__":
    key = jax.random.PRNGKey(0)
    k_emb1, k_emb2, k_emb3, k_par = jax.random.split(key, 4)

    N, D = 8, 32
    params = make_params(k_par, D)

    # tolerance accounts for the EUP approximate reciprocal in the softmax denominator
    TOL = dict(atol=5e-3, rtol=5e-3)

    # config 1: f32, batch splits into two tiles (grid=2 -> both v7x TensorCores busy)
    B1 = 32
    emb1 = jax.random.normal(k_emb1, (B1, N + 1, D), jnp.float32)
    out1 = jax.block_until_ready(att0_18_forward(emb1, params))
    ref1 = reference_forward(emb1, params)
    assert out1.shape == (B1, N, D)
    assert jnp.allclose(out1, ref1, **TOL), "mismatch vs reference (B=32)"

    # config 2: ragged tiny batch exercising the single exact-tile path
    B2 = 5
    emb2 = jax.random.normal(k_emb2, (B2, N + 1, D), jnp.float32)
    out2 = jax.block_until_ready(att0_18_forward(emb2, params))
    ref2 = reference_forward(emb2, params)
    assert out2.shape == (B2, N, D)
    assert jnp.allclose(out2, ref2, **TOL), "mismatch vs reference (B=5)"

    # config 3: bf16 I/O (half the HBM traffic), padded batch, grid=2
    B3 = 40
    emb3 = jax.random.normal(k_emb3, (B3, N + 1, D), jnp.float32).astype(jnp.bfloat16)
    out3 = jax.block_until_ready(att0_18_forward(emb3, params))
    ref3 = reference_forward(emb3.astype(jnp.float32), params)
    assert out3.shape == (B3, N, D)
    assert out3.dtype == jnp.bfloat16
    assert jnp.allclose(out3.astype(jnp.float32), ref3, atol=5e-2, rtol=5e-2), \
        "mismatch vs reference (B=40, bf16)"

    print("KERNEL_OK")
</pallas_src>

<mosaic_0001>
module attributes {stable_mosaic.version = 11 : i64} {
  func.func @att0_18_kernel(%arg0: i32, %arg1: memref<16x32xf32, #tpu.memory_space<vmem>>, %arg2: memref<16x8x32xf32, #tpu.memory_space<vmem>>, %arg3: memref<32x32xf32, #tpu.memory_space<vmem>>, %arg4: memref<1x32xf32, #tpu.memory_space<vmem>>, %arg5: memref<1x32xf32, #tpu.memory_space<vmem>>, %arg6: memref<32x32xf32, #tpu.memory_space<vmem>>, %arg7: memref<1x32xf32, #tpu.memory_space<vmem>>, %arg8: memref<32x32xf32, #tpu.memory_space<vmem>>, %arg9: memref<1x32xf32, #tpu.memory_space<vmem>>, %arg10: memref<16x256xf32, #tpu.memory_space<vmem>>) attributes {dimension_semantics = [#tpu.dimension_semantics<parallel>], iteration_bounds = array<i64: 2>, scalar_prefetch = 0 : i64, scratch_operands = 0 : i64, tpu.core_type = #tpu.core_type<tc>, window_params = [{transform_indices = @transform_0, window_bounds = array<i64: 16, 32>}, {transform_indices = @transform_1, window_bounds = array<i64: 16, 8, 32>}, {pipeline_mode = #tpu.pipeline_mode<synchronous>, transform_indices = @transform_2, window_bounds = array<i64: 32, 32>}, {pipeline_mode = #tpu.pipeline_mode<synchronous>, transform_indices = @transform_3, window_bounds = array<i64: 1, 32>}, {pipeline_mode = #tpu.pipeline_mode<synchronous>, transform_indices = @transform_4, window_bounds = array<i64: 1, 32>}, {pipeline_mode = #tpu.pipeline_mode<synchronous>, transform_indices = @transform_5, window_bounds = array<i64: 32, 32>}, {pipeline_mode = #tpu.pipeline_mode<synchronous>, transform_indices = @transform_6, window_bounds = array<i64: 1, 32>}, {pipeline_mode = #tpu.pipeline_mode<synchronous>, transform_indices = @transform_7, window_bounds = array<i64: 32, 32>}, {pipeline_mode = #tpu.pipeline_mode<synchronous>, transform_indices = @transform_8, window_bounds = array<i64: 1, 32>}, {transform_indices = @transform_9, window_bounds = array<i64: 16, 256>}]} {
    %c0 = arith.constant 0 : index
    %c0_0 = arith.constant 0 : index
    %0 = vector.load %arg1[%c0, %c0_0] : memref<16x32xf32, #tpu.memory_space<vmem>>, vector<16x32xf32>
    %c0_1 = arith.constant 0 : index
    %c0_2 = arith.constant 0 : index
    %c0_3 = arith.constant 0 : index
    %1 = vector.load %arg2[%c0_1, %c0_2, %c0_3] : memref<16x8x32xf32, #tpu.memory_space<vmem>>, vector<16x8x32xf32>
    %2 = vector.shape_cast %0 : vector<16x32xf32> to vector<16x1x32xf32>
    %3 = vector.broadcast %2 : vector<16x1x32xf32> to vector<16x8x32xf32>
    %4 = arith.mulf %3, %1 : vector<16x8x32xf32>
    %5 = vector.shape_cast %4 : vector<16x8x32xf32> to vector<128x32xf32>
    %c0_4 = arith.constant 0 : index
    %c0_5 = arith.constant 0 : index
    %6 = vector.load %arg3[%c0_4, %c0_5] : memref<32x32xf32, #tpu.memory_space<vmem>>, vector<32x32xf32>
    %cst = arith.constant dense<0.000000e+00> : vector<128x32xf32>
    %7 = tpu.matmul %5, %6, %cst {dimension_numbers = #tpu.dot_dimension_numbers<[1], [0], [0], [1], [0, 0, 1, 1], [], []>} : vector<128x32xf32>, vector<32x32xf32>, vector<128x32xf32> -> vector<128x32xf32>
    %c0_6 = arith.constant 0 : index
    %c0_7 = arith.constant 0 : index
    %8 = vector.load %arg4[%c0_6, %c0_7] : memref<1x32xf32, #tpu.memory_space<vmem>>, vector<1x32xf32>
    %9 = vector.broadcast %8 : vector<1x32xf32> to vector<128x32xf32>
    %10 = arith.addf %7, %9 : vector<128x32xf32>
    %cst_8 = arith.constant 0.000000e+00 : f32
    %11 = vector.broadcast %cst_8 : f32 to vector<128x32xf32>
    %12 = arith.cmpf oge, %10, %11 : vector<128x32xf32>
    %cst_9 = arith.constant 0.00999999977 : f32
    %13 = vector.broadcast %cst_9 : f32 to vector<128x32xf32>
    %14 = arith.mulf %13, %10 : vector<128x32xf32>
    %15 = arith.select %12, %10, %14 : vector<128x32xi1>, vector<128x32xf32>
    %c0_10 = arith.constant 0 : index
    %c0_11 = arith.constant 0 : index
    %16 = vector.load %arg6[%c0_10, %c0_11] : memref<32x32xf32, #tpu.memory_space<vmem>>, vector<32x32xf32>
    %cst_12 = arith.constant dense<0.000000e+00> : vector<128x32xf32>
    %17 = tpu.matmul %5, %16, %cst_12 {dimension_numbers = #tpu.dot_dimension_numbers<[1], [0], [0], [1], [0, 0, 1, 1], [], []>} : vector<128x32xf32>, vector<32x32xf32>, vector<128x32xf32> -> vector<128x32xf32>
    %c0_13 = arith.constant 0 : index
    %c0_14 = arith.constant 0 : index
    %18 = vector.load %arg7[%c0_13, %c0_14] : memref<1x32xf32, #tpu.memory_space<vmem>>, vector<1x32xf32>
    %19 = vector.broadcast %18 : vector<1x32xf32> to vector<128x32xf32>
    %20 = arith.addf %17, %19 : vector<128x32xf32>
    %21 = vector.shape_cast %15 : vector<128x32xf32> to vector<16x8x32xf32>
    %22 = vector.shape_cast %20 : vector<128x32xf32> to vector<16x8x32xf32>
    %c0_15 = arith.constant 0 : index
    %c0_16 = arith.constant 0 : index
    %23 = vector.load %arg5[%c0_15, %c0_16] : memref<1x32xf32, #tpu.memory_space<vmem>>, vector<1x32xf32>
    %24 = vector.shape_cast %23 : vector<1x32xf32> to vector<1x1x32xf32>
    %25 = vector.broadcast %24 : vector<1x1x32xf32> to vector<16x8x32xf32>
    %26 = arith.mulf %21, %25 : vector<16x8x32xf32>
    %cst_17 = arith.constant dense<0.000000e+00> : vector<16x8xf32>
    %27 = vector.multi_reduction <add>, %26, %cst_17 [2] : vector<16x8x32xf32> to vector<16x8xf32>
    %28 = vector.shape_cast %27 : vector<16x8xf32> to vector<16x8x1xf32>
    %cst_18 = arith.constant dense<0xFF800000> : vector<16x1xf32>
    %29 = vector.multi_reduction <maximumf>, %28, %cst_18 [1] : vector<16x8x1xf32> to vector<16x1xf32>
    %30 = vector.shape_cast %29 : vector<16x1xf32> to vector<16x1x1xf32>
    %31 = vector.broadcast %30 : vector<16x1x1xf32> to vector<16x8x1xf32>
    %32 = arith.subf %28, %31 : vector<16x8x1xf32>
    %33 = math.exp %32 : vector<16x8x1xf32>
    %cst_19 = arith.constant dense<0.000000e+00> : vector<16x1xf32>
    %34 = vector.multi_reduction <add>, %33, %cst_19 [1] : vector<16x8x1xf32> to vector<16x1xf32>
    %35 = vector.shape_cast %34 : vector<16x1xf32> to vector<16x1x1xf32>
    %36 = tpu.reciprocal %35 {approx = true} : vector<16x1x1xf32> -> vector<16x1x1xf32>
    %37 = vector.broadcast %36 : vector<16x1x1xf32> to vector<16x8x1xf32>
    %38 = arith.mulf %33, %37 : vector<16x8x1xf32>
    %39 = vector.broadcast %38 : vector<16x8x1xf32> to vector<16x8x32xf32>
    %40 = arith.mulf %39, %22 : vector<16x8x32xf32>
    %cst_20 = arith.constant dense<0.000000e+00> : vector<16x32xf32>
    %41 = vector.multi_reduction <add>, %40, %cst_20 [1] : vector<16x8x32xf32> to vector<16x32xf32>
    %c0_21 = arith.constant 0 : index
    %c0_22 = arith.constant 0 : index
    %42 = vector.load %arg8[%c0_21, %c0_22] : memref<32x32xf32, #tpu.memory_space<vmem>>, vector<32x32xf32>
    %cst_23 = arith.constant dense<0.000000e+00> : vector<16x32xf32>
    %43 = tpu.matmul %41, %42, %cst_23 {dimension_numbers = #tpu.dot_dimension_numbers<[1], [0], [0], [1], [0, 0, 1, 1], [], []>} : vector<16x32xf32>, vector<32x32xf32>, vector<16x32xf32> -> vector<16x32xf32>
    %c0_24 = arith.constant 0 : index
    %c0_25 = arith.constant 0 : index
    %44 = vector.load %arg9[%c0_24, %c0_25] : memref<1x32xf32, #tpu.memory_space<vmem>>, vector<1x32xf32>
    %45 = vector.broadcast %44 : vector<1x32xf32> to vector<16x32xf32>
    %46 = arith.addf %43, %45 : vector<16x32xf32>
    %47 = vector.shape_cast %46 : vector<16x32xf32> to vector<16x1x32xf32>
    %48 = vector.broadcast %47 : vector<16x1x32xf32> to vector<16x8x32xf32>
    %49 = arith.addf %4, %48 : vector<16x8x32xf32>
    %cst_26 = arith.constant 0.000000e+00 : f32
    %50 = vector.broadcast %cst_26 : f32 to vector<16x8x32xf32>
    %51 = arith.cmpf oge, %49, %50 : vector<16x8x32xf32>
    %cst_27 = arith.constant 0.00999999977 : f32
    %52 = vector.broadcast %cst_27 : f32 to vector<16x8x32xf32>
    %53 = arith.mulf %52, %49 : vector<16x8x32xf32>
    %54 = arith.select %51, %49, %53 : vector<16x8x32xi1>, vector<16x8x32xf32>
    %55 = vector.shape_cast %54 : vector<16x8x32xf32> to vector<16x256xf32>
    %c0_28 = arith.constant 0 : index
    %c0_29 = arith.constant 0 : index
    %56 = vector.load %arg10[%c0_28, %c0_29] : memref<16x256xf32, #tpu.memory_space<vmem>>, vector<16x256xf32>
    tpu.vector_store %arg10[%c0_28, %c0_29], %55 {strides = array<i32>} : memref<16x256xf32, #tpu.memory_space<vmem>>, vector<16x256xf32>,
    return
  }
  func.func @transform_0(%arg0: i32) -> (i32, i32) {
    %c0_i32 = arith.constant 0 : i32
    %c0_i32_0 = arith.constant 0 : i32
    return %arg0, %c0_i32 : i32, i32
  }
  func.func @transform_1(%arg0: i32) -> (i32, i32, i32) {
    %c0_i32 = arith.constant 0 : i32
    %c0_i32_0 = arith.constant 0 : i32
    %c0_i32_1 = arith.constant 0 : i32
    return %arg0, %c0_i32, %c0_i32_0 : i32, i32, i32
  }
  func.func @transform_2(%arg0: i32) -> (i32, i32) {
    %c0_i32 = arith.constant 0 : i32
    %c0_i32_0 = arith.constant 0 : i32
    %c0_i32_1 = arith.constant 0 : i32
    return %c0_i32, %c0_i32_0 : i32, i32
  }
  func.func @transform_3(%arg0: i32) -> (i32, i32) {
    %c0_i32 = arith.constant 0 : i32
    %c0_i32_0 = arith.constant 0 : i32
    %c0_i32_1 = arith.constant 0 : i32
    return %c0_i32, %c0_i32_0 : i32, i32
  }
  func.func @transform_4(%arg0: i32) -> (i32, i32) {
    %c0_i32 = arith.constant 0 : i32
    %c0_i32_0 = arith.constant 0 : i32
    %c0_i32_1 = arith.constant 0 : i32
    return %c0_i32, %c0_i32_0 : i32, i32
  }
  func.func @transform_5(%arg0: i32) -> (i32, i32) {
    %c0_i32 = arith.constant 0 : i32
    %c0_i32_0 = arith.constant 0 : i32
    %c0_i32_1 = arith.constant 0 : i32
    return %c0_i32, %c0_i32_0 : i32, i32
  }
  func.func @transform_6(%arg0: i32) -> (i32, i32) {
    %c0_i32 = arith.constant 0 : i32
    %c0_i32_0 = arith.constant 0 : i32
    %c0_i32_1 = arith.constant 0 : i32
    return %c0_i32, %c0_i32_0 : i32, i32
  }
  func.func @transform_7(%arg0: i32) -> (i32, i32) {
    %c0_i32 = arith.constant 0 : i32
    %c0_i32_0 = arith.constant 0 : i32
    %c0_i32_1 = arith.constant 0 : i32
    return %c0_i32, %c0_i32_0 : i32, i32
  }
  func.func @transform_8(%arg0: i32) -> (i32, i32) {
    %c0_i32 = arith.constant 0 : i32
    %c0_i32_0 = arith.constant 0 : i32
    %c0_i32_1 = arith.constant 0 : i32
    return %c0_i32, %c0_i32_0 : i32, i32
  }
  func.func @transform_9(%arg0: i32) -> (i32, i32) {
    %c0_i32 = arith.constant 0 : i32
    %c0_i32_0 = arith.constant 0 : i32
    return %arg0, %c0_i32 : i32, i32
  }
}

</mosaic_0001>

<llo_original>
// kernel: tpu_custom_call.1
$region0: #{tpu_custom_call.1}
  #allocation0 [shape = 'u32[]', space=smem, size = 0x4, offset = 0x4, fixed_abs, tag = 'smem constant byte address 0x4 - core index']
  #allocation1 [shape = 'u32[144,128]{1,0:T(1,128)}', space=vmem, size = 0x12000, scoped, tag = 'internal scratch']
  %s0 = inlined_call_operand.hbm [shape: f32[32,32], index: 0, kind: input, shape index: {}]
  %s1 = inlined_call_operand.hbm [shape: f32[32,8,32], index: 1, kind: input, shape index: {}]
  %s2 = inlined_call_operand.hbm [shape: f32[32,32], index: 2, kind: input, shape index: {}]
  %s3 = inlined_call_operand.vmem [shape: f32[1,32], index: 3, kind: input, shape index: {}]
  %s4 = inlined_call_operand.vmem [shape: f32[1,32], index: 4, kind: input, shape index: {}]
  %s5 = inlined_call_operand.hbm [shape: f32[32,32], index: 5, kind: input, shape index: {}]
  %s6 = inlined_call_operand.vmem [shape: f32[1,32], index: 6, kind: input, shape index: {}]
  %s7 = inlined_call_operand.hbm [shape: f32[32,32], index: 7, kind: input, shape index: {}]
  %s8 = inlined_call_operand.vmem [shape: f32[1,32], index: 8, kind: input, shape index: {}]
  %s9 = inlined_call_operand.hbm [shape: f32[32,256], index: 9, kind: output, shape index: {}]
  %s10 = sld [smem:[#allocation0]]
  $region89: #{tpu_custom_call.1} parent=0
    _
  %s12 = ssub.s32 1, %s10
  %s13 = scalar_select 0, %s12, %s10
  $region1: #{tpu_custom_call.1} parent=0
    #allocation2 [shape = 'u8[16384]{0}', space=vmem, size = 0x4000, scoped, tag = 'input window, operand 0']
    #allocation3 [shape = 's32[2]{0}', space=sflag, size = 0x8, scoped, tag = 'scoped memory for tpu_custom_call.1']
    #allocation4 [shape = 's32[2]{0}', space=sflag, size = 0x8, scoped, tag = 'scoped memory for tpu_custom_call.1']
    #allocation5 [shape = 'u8[131072]{0}', space=vmem, size = 0x20000, scoped, tag = 'input window, operand 1']
    #allocation6 [shape = 's32[2]{0}', space=sflag, size = 0x8, scoped, tag = 'scoped memory for tpu_custom_call.1']
    #allocation7 [shape = 'u8[16384]{0}', space=vmem, size = 0x4000, scoped, tag = 'input window, operand 2, single buffered']
    #allocation8 [shape = 'u8[16384]{0}', space=vmem, size = 0x4000, scoped, tag = 'input window, operand 5, single buffered']
    #allocation9 [shape = 's32[1]{0}', space=sflag, size = 0x4, scoped, tag = 'scoped memory for tpu_custom_call.1']
    #allocation10 [shape = 'u8[16384]{0}', space=vmem, size = 0x4000, scoped, tag = 'input window, operand 7, single buffered']
    #allocation11 [shape = 'u8[32768]{0}', space=vmem, size = 0x8000, scoped, tag = 'output window, operand 0']
    %14 = vsyncpa [#allocation3], 0
    %s15 = scalar_lea.sflag [#allocation3], 1
    %16 = vsyncpa %s15, 0
    %17 = vsyncpa [#allocation6], 0
    %s18 = scalar_lea.sflag [#allocation6], 1
    %19 = vsyncpa %s18, 0
    %20 = vsyncpa [#allocation9], 0
    %21 = vsyncpa [#allocation4], 0
    %s22 = scalar_lea.sflag [#allocation4], 1
    %23 = vsyncpa %s22, 0
    loop: start=0, step=1, limit=4
    $region2: #{tpu_custom_call.1} parent=1 // loop_pre_header
      _
    $region3: #{tpu_custom_call.1} parent=1 // loop_header
      %s25 = sphi 0, %s29
      %p26 = scmp.ge.s32.totalorder %s25, 4
      %s35 = sphi 0, %s37
      %s38 = sphi 0, %s35
      %s39 = sphi 0, %s38
      %s55 = sphi 0, %s39
      %s61 = sphi 0, %s63
      %s64 = sphi 0, %s61
      %s65 = sphi 0, %s64
      %s81 = sphi 0, %s65
      %s85 = sphi 0, %s85
      %s87 = sphi 0, %s85
      %s88 = sphi 0, %s87
      %s102 = sphi 0, %s88
      %s106 = sphi 0, %s106
      %s108 = sphi 0, %s106
      %s109 = sphi 0, %s108
      %s123 = sphi 0, %s109
      %s127 = sphi 0, %s127
      %s129 = sphi 0, %s127
      %s130 = sphi 0, %s129
      %s144 = sphi 0, %s130
      %s148 = sphi 0, %s148
      %s150 = sphi 0, %s148
      %s151 = sphi 0, %s150
      %s165 = sphi 0, %s151
      %s169 = sphi 0, %s169
      %s171 = sphi 0, %s169
      %s172 = sphi 0, %s171
      %s186 = sphi 0, %s172
      %s190 = sphi 0, %s190
      %s192 = sphi 0, %s190
      %s193 = sphi 0, %s192
      %s207 = sphi 0, %s193
      %s211 = sphi 0, %s211
      %s213 = sphi 0, %s211
      %s214 = sphi 0, %s213
      %s228 = sphi 0, %s214
      %s234 = sphi 0, %s236
      %s237 = sphi 0, %s234
      %s238 = sphi 0, %s237
      %s254 = sphi 0, %s238
    $region4: #{tpu_custom_call.1} parent=1 // loop_header_branch
      %28 = sbr.rel (%p26) target = $region8
    $region5: #{tpu_custom_call.1} parent=1 // loop_body
      %s30 = ssub.s32 %s25, 1
      %s31 = ssub.s32 %s25, 2
      %s32 = sadd.s32 %s25, 1
      %s33 = ssub.s32 %s25, %s32
      %p34 = scmp.eq.s32.totalorder %s33, 0
      %s36 = sadd.s32 %s35, 1
      %s37 = scalar_select %p34, %s35, %s36
      %p40 = pneg %p34
      %p41 = scmp.eq.s32.totalorder %s25, 1
      %p42 = por %p40, %p41
      %p43 = scmp.ne.s32.totalorder %s35, %s38
      %p44 = scmp.eq.s32.totalorder %s25, 0
      %p45 = por %p43, %p44
      %p46 = scmp.ne.s32.totalorder %s35, %s38
      %p47 = scmp.eq.s32.totalorder %s30, 1
      %p48 = por %p46, %p47
      %p49 = scmp.ne.s32.totalorder %s38, %s39
      %p50 = scmp.eq.s32.totalorder %s30, 0
      %p51 = por %p49, %p50
      %p52 = scmp.ne.s32.totalorder %s38, %s39
      %p53 = scmp.eq.s32.totalorder %s31, 1
      %p54 = por %p52, %p53
      %p56 = scmp.ne.s32.totalorder %s39, %s55
      %p57 = scmp.eq.s32.totalorder %s31, 0
      %p58 = por %p56, %p57
      %s59 = ssub.s32 %s25, %s32
      %p60 = scmp.eq.s32.totalorder %s59, 0
      %s62 = sadd.s32 %s61, 1
      %s63 = scalar_select %p60, %s61, %s62
      %p66 = pneg %p60
      %p67 = scmp.eq.s32.totalorder %s25, 1
      %p68 = por %p66, %p67
      %p69 = scmp.ne.s32.totalorder %s61, %s64
      %p70 = scmp.eq.s32.totalorder %s25, 0
      %p71 = por %p69, %p70
      %p72 = scmp.ne.s32.totalorder %s61, %s64
      %p73 = scmp.eq.s32.totalorder %s30, 1
      %p74 = por %p72, %p73
      %p75 = scmp.ne.s32.totalorder %s64, %s65
      %p76 = scmp.eq.s32.totalorder %s30, 0
      %p77 = por %p75, %p76
      %p78 = scmp.ne.s32.totalorder %s64, %s65
      %p79 = scmp.eq.s32.totalorder %s31, 1
      %p80 = por %p78, %p79
      %p82 = scmp.ne.s32.totalorder %s65, %s81
      %p83 = scmp.eq.s32.totalorder %s31, 0
      %p84 = por %p82, %p83
      %s86 = sadd.s32 %s85, 1
      %p89 = scmp.eq.s32.totalorder %s25, 1
      %p90 = scmp.ne.s32.totalorder %s85, %s87
      %p91 = scmp.eq.s32.totalorder %s25, 0
      %p92 = por %p90, %p91
      %p93 = scmp.ne.s32.totalorder %s85, %s87
      %p94 = scmp.eq.s32.totalorder %s30, 1
      %p95 = por %p93, %p94
      %p96 = scmp.ne.s32.totalorder %s87, %s88
      %p97 = scmp.eq.s32.totalorder %s30, 0
      %p98 = por %p96, %p97
      %p99 = scmp.ne.s32.totalorder %s87, %s88
      %p100 = scmp.eq.s32.totalorder %s31, 1
      %p101 = por %p99, %p100
      %p103 = scmp.ne.s32.totalorder %s88, %s102
      %p104 = scmp.eq.s32.totalorder %s31, 0
      %p105 = por %p103, %p104
      %s107 = sadd.s32 %s106, 1
      %p110 = scmp.eq.s32.totalorder %s25, 1
      %p111 = scmp.ne.s32.totalorder %s106, %s108
      %p112 = scmp.eq.s32.totalorder %s25, 0
      %p113 = por %p111, %p112
      %p114 = scmp.ne.s32.totalorder %s106, %s108
      %p115 = scmp.eq.s32.totalorder %s30, 1
      %p116 = por %p114, %p115
      %p117 = scmp.ne.s32.totalorder %s108, %s109
      %p118 = scmp.eq.s32.totalorder %s30, 0
      %p119 = por %p117, %p118
      %p120 = scmp.ne.s32.totalorder %s108, %s109
      %p121 = scmp.eq.s32.totalorder %s31, 1
      %p122 = por %p120, %p121
      %p124 = scmp.ne.s32.totalorder %s109, %s123
      %p125 = scmp.eq.s32.totalorder %s31, 0
      %p126 = por %p124, %p125
      %s128 = sadd.s32 %s127, 1
      %p131 = scmp.eq.s32.totalorder %s25, 1
      %p132 = scmp.ne.s32.totalorder %s127, %s129
      %p133 = scmp.eq.s32.totalorder %s25, 0
      %p134 = por %p132, %p133
      %p135 = scmp.ne.s32.totalorder %s127, %s129
      %p136 = scmp.eq.s32.totalorder %s30, 1
      %p137 = por %p135, %p136
      %p138 = scmp.ne.s32.totalorder %s129, %s130
      %p139 = scmp.eq.s32.totalorder %s30, 0
      %p140 = por %p138, %p139
      %p141 = scmp.ne.s32.totalorder %s129, %s130
      %p142 = scmp.eq.s32.totalorder %s31, 1
      %p143 = por %p141, %p142
      %p145 = scmp.ne.s32.totalorder %s130, %s144
      %p146 = scmp.eq.s32.totalorder %s31, 0
      %p147 = por %p145, %p146
      %s149 = sadd.s32 %s148, 1
      %p152 = scmp.eq.s32.totalorder %s25, 1
      %p153 = scmp.ne.s32.totalorder %s148, %s150
      %p154 = scmp.eq.s32.totalorder %s25, 0
      %p155 = por %p153, %p154
      %p156 = scmp.ne.s32.totalorder %s148, %s150
      %p157 = scmp.eq.s32.totalorder %s30, 1
      %p158 = por %p156, %p157
      %p159 = scmp.ne.s32.totalorder %s150, %s151
      %p160 = scmp.eq.s32.totalorder %s30, 0
      %p161 = por %p159, %p160
      %p162 = scmp.ne.s32.totalorder %s150, %s151
      %p163 = scmp.eq.s32.totalorder %s31, 1
      %p164 = por %p162, %p163
      %p166 = scmp.ne.s32.totalorder %s151, %s165
      %p167 = scmp.eq.s32.totalorder %s31, 0
      %p168 = por %p166, %p167
      %s170 = sadd.s32 %s169, 1
      %p173 = scmp.eq.s32.totalorder %s25, 1
      %p174 = scmp.ne.s32.totalorder %s169, %s171
      %p175 = scmp.eq.s32.totalorder %s25, 0
      %p176 = por %p174, %p175
      %p177 = scmp.ne.s32.totalorder %s169, %s171
      %p178 = scmp.eq.s32.totalorder %s30, 1
      %p179 = por %p177, %p178
      %p180 = scmp.ne.s32.totalorder %s171, %s172
      %p181 = scmp.eq.s32.totalorder %s30, 0
      %p182 = por %p180, %p181
      %p183 = scmp.ne.s32.totalorder %s171, %s172
      %p184 = scmp.eq.s32.totalorder %s31, 1
      %p185 = por %p183, %p184
      %p187 = scmp.ne.s32.totalorder %s172, %s186
      %p188 = scmp.eq.s32.totalorder %s31, 0
      %p189 = por %p187, %p188
      %s191 = sadd.s32 %s190, 1
      %p194 = scmp.eq.s32.totalorder %s25, 1
      %p195 = scmp.ne.s32.totalorder %s190, %s192
      %p196 = scmp.eq.s32.totalorder %s25, 0
      %p197 = por %p195, %p196
      %p198 = scmp.ne.s32.totalorder %s190, %s192
      %p199 = scmp.eq.s32.totalorder %s30, 1
      %p200 = por %p198, %p199
      %p201 = scmp.ne.s32.totalorder %s192, %s193
      %p202 = scmp.eq.s32.totalorder %s30, 0
      %p203 = por %p201, %p202
      %p204 = scmp.ne.s32.totalorder %s192, %s193
      %p205 = scmp.eq.s32.totalorder %s31, 1
      %p206 = por %p204, %p205
      %p208 = scmp.ne.s32.totalorder %s193, %s207
      %p209 = scmp.eq.s32.totalorder %s31, 0
      %p210 = por %p208, %p209
      %s212 = sadd.s32 %s211, 1
      %p215 = scmp.eq.s32.totalorder %s25, 1
      %p216 = scmp.ne.s32.totalorder %s211, %s213
      %p217 = scmp.eq.s32.totalorder %s25, 0
      %p218 = por %p216, %p217
      %p219 = scmp.ne.s32.totalorder %s211, %s213
      %p220 = scmp.eq.s32.totalorder %s30, 1
      %p221 = por %p219, %p220
      %p222 = scmp.ne.s32.totalorder %s213, %s214
      %p223 = scmp.eq.s32.totalorder %s30, 0
      %p224 = por %p222, %p223
      %p225 = scmp.ne.s32.totalorder %s213, %s214
      %p226 = scmp.eq.s32.totalorder %s31, 1
      %p227 = por %p225, %p226
      %p229 = scmp.ne.s32.totalorder %s214, %s228
      %p230 = scmp.eq.s32.totalorder %s31, 0
      %p231 = por %p229, %p230
      %s232 = ssub.s32 %s25, %s32
      %p233 = scmp.eq.s32.totalorder %s232, 0
      %s235 = sadd.s32 %s234, 1
      %s236 = scalar_select %p233, %s234, %s235
      %p239 = pneg %p233
      %p240 = scmp.eq.s32.totalorder %s25, 1
      %p241 = por %p239, %p240
      %p242 = scmp.ne.s32.totalorder %s234, %s237
      %p243 = scmp.eq.s32.totalorder %s25, 0
      %p244 = por %p242, %p243
      %p245 = scmp.ne.s32.totalorder %s234, %s237
      %p246 = scmp.eq.s32.totalorder %s30, 1
      %p247 = por %p245, %p246
      %p248 = scmp.ne.s32.totalorder %s237, %s238
      %p249 = scmp.eq.s32.totalorder %s30, 0
      %p250 = por %p248, %p249
      %p251 = scmp.ne.s32.totalorder %s237, %s238
      %p252 = scmp.eq.s32.totalorder %s31, 1
      %p253 = por %p251, %p252
      %p255 = scmp.ne.s32.totalorder %s238, %s254
      %p256 = scmp.eq.s32.totalorder %s31, 0
      %p257 = por %p255, %p256
      %p258 = scmp.le.s32.totalorder 1, %s25
      %p259 = scmp.lt.s32.totalorder %s25, 3
      %p260 = pnand %p258, %p259
      %p261 = pneg %p260
      // Predicated region
      $region9: #{tpu_custom_call.1} parent=5 // pred_check
        _
      $region10: #{tpu_custom_call.1} parent=5 // pred_check_branch
        %263 = sbr.rel (%p260) target = $region12
      $region11: #{tpu_custom_call.1} parent=5 // pred_region
        %s264 = ssub.s32 %s25, 1
        // Predicated region
        $region13: #{tpu_custom_call.1} parent=11 // pred_check
          %p265 = pneg %p98
        $region14: #{tpu_custom_call.1} parent=11 // pred_check_branch
          %267 = sbr.rel (%p265) target = $region16
        $region15: #{tpu_custom_call.1} parent=11 // pred_region
          %s269 = ssub.s32 512, 512
          %270 = vsyncadd [#allocation6], %s269
          %s271 = sshll.u32 [#allocation7], 4
          %s272 = int_to_ptr.vmem [resolvable:$true] %s271
          %277 = dma.hbm_to_vmem [thread:$0]  %s2, 512, %s272, [#allocation6], 128, 128, 8
        $region16: #{tpu_custom_call.1} parent=11 // pred_fallthru
          _
        // Predicated region
        $region17: #{tpu_custom_call.1} parent=11 // pred_check
          %p278 = pneg %p119
        $region18: #{tpu_custom_call.1} parent=11 // pred_check_branch
          %280 = sbr.rel (%p278) target = $region20
        $region19: #{tpu_custom_call.1} parent=11 // pred_region
          _
        $region20: #{tpu_custom_call.1} parent=11 // pred_fallthru
          _
        // Predicated region
        $region21: #{tpu_custom_call.1} parent=11 // pred_check
          %p281 = pneg %p140
        $region22: #{tpu_custom_call.1} parent=11 // pred_check_branch
          %283 = sbr.rel (%p281) target = $region24
        $region23: #{tpu_custom_call.1} parent=11 // pred_region
          _
        $region24: #{tpu_custom_call.1} parent=11 // pred_fallthru
          _
        // Predicated region
        $region25: #{tpu_custom_call.1} parent=11 // pred_check
          %p284 = pneg %p161
        $region26: #{tpu_custom_call.1} parent=11 // pred_check_branch
          %286 = sbr.rel (%p284) target = $region28
        $region27: #{tpu_custom_call.1} parent=11 // pred_region
          %s288 = ssub.s32 512, 512
          %289 = vsyncadd [#allocation9], %s288
          %s290 = sshll.u32 [#allocation8], 4
          %s291 = int_to_ptr.vmem [resolvable:$true] %s290
          %296 = dma.hbm_to_vmem [thread:$0]  %s5, 512, %s291, [#allocation9], 128, 128, 8
        $region28: #{tpu_custom_call.1} parent=11 // pred_fallthru
          _
        // Predicated region
        $region29: #{tpu_custom_call.1} parent=11 // pred_check
          %p297 = pneg %p182
        $region30: #{tpu_custom_call.1} parent=11 // pred_check_branch
          %299 = sbr.rel (%p297) target = $region32
        $region31: #{tpu_custom_call.1} parent=11 // pred_region
          _
        $region32: #{tpu_custom_call.1} parent=11 // pred_fallthru
          _
        // Predicated region
        $region33: #{tpu_custom_call.1} parent=11 // pred_check
          %p300 = pneg %p203
        $region34: #{tpu_custom_call.1} parent=11 // pred_check_branch
          %302 = sbr.rel (%p300) target = $region36
        $region35: #{tpu_custom_call.1} parent=11 // pred_region
          %s304 = ssub.s32 512, 512
          %305 = vsyncadd [#allocation9], %s304
          %s306 = sshll.u32 [#allocation10], 4
          %s307 = int_to_ptr.vmem [resolvable:$true] %s306
          %312 = dma.hbm_to_vmem [thread:$0]  %s7, 512, %s307, [#allocation9], 128, 128, 8
        $region36: #{tpu_custom_call.1} parent=11 // pred_fallthru
          _
        // Predicated region
        $region37: #{tpu_custom_call.1} parent=11 // pred_check
          %p313 = pneg %p224
        $region38: #{tpu_custom_call.1} parent=11 // pred_check_branch
          %315 = sbr.rel (%p313) target = $region40
        $region39: #{tpu_custom_call.1} parent=11 // pred_region
          _
        $region40: #{tpu_custom_call.1} parent=11 // pred_fallthru
          _
      $region12: #{tpu_custom_call.1} parent=5 // pred_fallthru
        _
      %p316 = scmp.lt.s32.totalorder %s25, 2
      // Predicated region
      $region41: #{tpu_custom_call.1} parent=5 // pred_check
        %p317 = pneg %p316
      $region42: #{tpu_custom_call.1} parent=5 // pred_check_branch
        %319 = sbr.rel (%p317) target = $region44
      $region43: #{tpu_custom_call.1} parent=5 // pred_region
        // Predicated region
        $region45: #{tpu_custom_call.1} parent=43 // pred_check
          %p320 = pneg %p45
        $region46: #{tpu_custom_call.1} parent=43 // pred_check_branch
          %322 = sbr.rel (%p320) target = $region48
        $region47: #{tpu_custom_call.1} parent=43 // pred_region
          %s323 = sand.u32 %s35, 1
          %s324 = scalar_lea.sflag [#allocation3], %s323
          %s325 = sand.u32 %s35, 1
          %s326 = smul.addr %s325, 16
          %s327 = scalar_lea.vmem [#allocation2], %s326
          %s328 = smul.u32 2, %s25
          %s330 = ssub.s32 256, 256
          %331 = vsyncadd %s324, %s330
          %s332 = smul.addr %s328, 128
          %s333 = scalar_lea.hbm %s0, %s332
          %s334 = sshll.u32 %s327, 4
          %s335 = int_to_ptr.vmem [resolvable:$true] %s334
          %340 = dma.hbm_to_vmem [thread:$0]  %s333, 256, %s335, %s324, 128, 128, 8
        $region48: #{tpu_custom_call.1} parent=43 // pred_fallthru
          _
        // Predicated region
        $region49: #{tpu_custom_call.1} parent=43 // pred_check
          %p341 = pneg %p71
        $region50: #{tpu_custom_call.1} parent=43 // pred_check_branch
          %343 = sbr.rel (%p341) target = $region52
        $region51: #{tpu_custom_call.1} parent=43 // pred_region
          %s344 = sand.u32 %s25, 1
          %s345 = scalar_lea.sflag [#allocation6], %s344
          %s346 = sand.u32 %s61, 1
          %s347 = smul.addr %s346, 128
          %s348 = scalar_lea.vmem [#allocation5], %s347
          %s349 = smul.u32 16, %s25
          %s351 = ssub.s32 2048, 2048
          %352 = vsyncadd %s345, %s351
          %s353 = smul.addr %s349, 128
          %s354 = scalar_lea.hbm %s1, %s353
          %s355 = sshll.u32 %s348, 4
          %s356 = int_to_ptr.vmem [resolvable:$true] %s355
          %361 = dma.hbm_to_vmem [thread:$0]  %s354, 2048, %s356, %s345, 128, 128, 8
        $region52: #{tpu_custom_call.1} parent=43 // pred_fallthru
          _
      $region44: #{tpu_custom_call.1} parent=5 // pred_fallthru
        _
      %p362 = scmp.le.s32.totalorder 1, %s25
      %p363 = scmp.lt.s32.totalorder %s25, 3
      %p364 = pnand %p362, %p363
      %p365 = pneg %p364
      // Predicated region
      $region53: #{tpu_custom_call.1} parent=5 // pred_check
        _
      $region54: #{tpu_custom_call.1} parent=5 // pred_check_branch
        %367 = sbr.rel (%p364) target = $region56
      $region55: #{tpu_custom_call.1} parent=5 // pred_region
        %s368 = ssub.s32 %s25, 1
        %s369 = sand.u32 %s38, 1
        %s370 = scalar_lea.sflag [#allocation3], %s369
        %s371 = sand.u32 %s38, 1
        %s372 = smul.addr %s371, 16
        %s373 = scalar_lea.vmem [#allocation2], %s372
        // Predicated region
        $region57: #{tpu_custom_call.1} parent=55 // pred_check
          %p374 = pneg %p51
        $region58: #{tpu_custom_call.1} parent=55 // pred_check_branch
          %376 = sbr.rel (%p374) target = $region60
        $region59: #{tpu_custom_call.1} parent=55 // pred_region
          %377 = dma.done %s370, 256
        $region60: #{tpu_custom_call.1} parent=55 // pred_fallthru
          _
        %s378 = sand.u32 %s30, 1
        %s379 = scalar_lea.sflag [#allocation6], %s378
        %s380 = sand.u32 %s64, 1
        %s381 = smul.addr %s380, 128
        %s382 = scalar_lea.vmem [#allocation5], %s381
        // Predicated region
        $region61: #{tpu_custom_call.1} parent=55 // pred_check
          %p383 = pneg %p77
        $region62: #{tpu_custom_call.1} parent=55 // pred_check_branch
          %385 = sbr.rel (%p383) target = $region64
        $region63: #{tpu_custom_call.1} parent=55 // pred_region
          %386 = dma.done %s379, 2048
        $region64: #{tpu_custom_call.1} parent=55 // pred_fallthru
          _
        // Predicated region
        $region65: #{tpu_custom_call.1} parent=55 // pred_check
          %p387 = pneg %p98
        $region66: #{tpu_custom_call.1} parent=55 // pred_check_branch
          %389 = sbr.rel (%p387) target = $region68
        $region67: #{tpu_custom_call.1} parent=55 // pred_region
          %390 = dma.done [#allocation6], 512
        $region68: #{tpu_custom_call.1} parent=55 // pred_fallthru
          _
        // Predicated region
        $region69: #{tpu_custom_call.1} parent=55 // pred_check
          %p391 = pneg %p161
        $region70: #{tpu_custom_call.1} parent=55 // pred_check_branch
          %393 = sbr.rel (%p391) target = $region72
        $region71: #{tpu_custom_call.1} parent=55 // pred_region
          %394 = dma.done [#allocation9], 512
        $region72: #{tpu_custom_call.1} parent=55 // pred_fallthru
          _
        // Predicated region
        $region73: #{tpu_custom_call.1} parent=55 // pred_check
          %p395 = pneg %p203
        $region74: #{tpu_custom_call.1} parent=55 // pred_check_branch
          %397 = sbr.rel (%p395) target = $region76
        $region75: #{tpu_custom_call.1} parent=55 // pred_region
          %398 = dma.done [#allocation9], 512
        $region76: #{tpu_custom_call.1} parent=55 // pred_fallthru
          _
        %s399 = sand.u32 %s38, 1
        %s400 = scalar_lea.sflag [#allocation3], %s399
        %s401 = sand.u32 %s38, 1
        %s402 = smul.addr %s401, 16
        %s403 = scalar_lea.vmem [#allocation2], %s402
        %p404 = pneg %p51
        %p405 = pneg %p48
        %s406 = sand.u32 %s30, 1
        %s407 = scalar_lea.sflag [#allocation6], %s406
        %s408 = sand.u32 %s64, 1
        %s409 = smul.addr %s408, 128
        %s410 = scalar_lea.vmem [#allocation5], %s409
        %p411 = pneg %p77
        %p412 = pneg %p74
        %p413 = pneg %p98
        %p414 = pneg %p95
        %p415 = pneg %p119
        %p416 = pneg %p116
        %p417 = pneg %p140
        %p418 = pneg %p137
        %p419 = pneg %p161
        %p420 = pneg %p158
        %p421 = pneg %p182
        %p422 = pneg %p179
        %p423 = pneg %p203
        %p424 = pneg %p200
        %p425 = pneg %p224
        %p426 = pneg %p221
        %p427 = pneg %p250
        %p428 = pneg %p247
        %s429 = sand.u32 %s237, 1
        %s430 = scalar_lea.sflag [#allocation4], %s429
        %s431 = sand.u32 %s237, 1
        %s432 = smul.addr %s431, 32
        %s433 = scalar_lea.vmem [#allocation11], %s432
        %s434 = smul.u32 2, %s30
        %s435 = smul.u32 16, %s30
        %s436 = smul.u32 2, %s30
        %v437 = vld [vmem:[%s373] sm:$0xff]
        %v438 = vld [vmem:[%s373 + $0x8] sm:$0xff]
        %v439 = vld [vmem:[%s382] sm:$0xff]
        %v440 = vld [vmem:[%s382 + $0x8] sm:$0xff]
        %v441 = vld [vmem:[%s382 + $0x10] sm:$0xff]
        %v442 = vld [vmem:[%s382 + $0x18] sm:$0xff]
        %v443 = vld [vmem:[%s382 + $0x20] sm:$0xff]
        %v444 = vld [vmem:[%s382 + $0x28] sm:$0xff]
        %v445 = vld [vmem:[%s382 + $0x30] sm:$0xff]
        %v446 = vld [vmem:[%s382 + $0x38] sm:$0xff]
        %v447 = vld [vmem:[%s382 + $0x40] sm:$0xff]
        %v448 = vld [vmem:[%s382 + $0x48] sm:$0xff]
        %v449 = vld [vmem:[%s382 + $0x50] sm:$0xff]
        %v450 = vld [vmem:[%s382 + $0x58] sm:$0xff]
        %v451 = vld [vmem:[%s382 + $0x60] sm:$0xff]
        %v452 = vld [vmem:[%s382 + $0x68] sm:$0xff]
        %v453 = vld [vmem:[%s382 + $0x70] sm:$0xff]
        %v454 = vld [vmem:[%s382 + $0x78] sm:$0xff]
        %v457 = vcombine.high %v437, %v437
        %v459 = vunpack.c.l.s4 1966171168
        %v460 = vunpack.c.0.s8 %v459
        %v461 = vlaneseq
        %v462 = vshrl.u32 %v461, 7
        %v463 = vsub.s32 %v460, %v462
        %v464 = vrot.slane %v437, %v463
        %v466 = vunpack.c.l.s4 1966171168
        %v467 = vunpack.c.0.s8 %v466
        %v468 = vlaneseq
        %v469 = vshrl.u32 %v468, 7
        %v470 = vsub.s32 %v467, %v469
        %v471 = vrot.slane %v457, %v470
        %v472 = vcombine.high %v464, %v464
        %v473 = vcombine.high %v471, %v471
        %v475 = vunpack.c.l.s4 1966171168
        %v476 = vunpack.c.0.s8 %v475
        %v477 = vlaneseq
        %v478 = vshrl.u32 %v477, 7
        %v479 = vsub.s32 %v476, %v478
        %v480 = vrot.slane %v464, %v479
        %v482 = vunpack.c.l.s4 1966171168
        %v483 = vunpack.c.0.s8 %v482
        %v484 = vlaneseq
        %v485 = vshrl.u32 %v484, 7
        %v486 = vsub.s32 %v483, %v485
        %v487 = vrot.slane %v471, %v486
        %v489 = vunpack.c.l.s4 1966171168
        %v490 = vunpack.c.0.s8 %v489
        %v491 = vlaneseq
        %v492 = vshrl.u32 %v491, 7
        %v493 = vsub.s32 %v490, %v492
        %v494 = vrot.slane %v472, %v493
        %v496 = vunpack.c.l.s4 1966171168
        %v497 = vunpack.c.0.s8 %v496
        %v498 = vlaneseq
        %v499 = vshrl.u32 %v498, 7
        %v500 = vsub.s32 %v497, %v499
        %v501 = vrot.slane %v473, %v500
        %v502 = vcombine.high %v480, %v480
        %v503 = vcombine.high %v487, %v487
        %v504 = vcombine.high %v494, %v494
        %v505 = vcombine.high %v501, %v501
        %v506 = vcombine.high %v438, %v438
        %v508 = vunpack.c.l.s4 1966171168
        %v509 = vunpack.c.0.s8 %v508
        %v510 = vlaneseq
        %v511 = vshrl.u32 %v510, 7
        %v512 = vsub.s32 %v509, %v511
        %v513 = vrot.slane %v438, %v512
        %v515 = vunpack.c.l.s4 1966171168
        %v516 = vunpack.c.0.s8 %v515
        %v517 = vlaneseq
        %v518 = vshrl.u32 %v517, 7
        %v519 = vsub.s32 %v516, %v518
        %v520 = vrot.slane %v506, %v519
        %v521 = vcombine.high %v513, %v513
        %v522 = vcombine.high %v520, %v520
        %v524 = vunpack.c.l.s4 1966171168
        %v525 = vunpack.c.0.s8 %v524
        %v526 = vlaneseq
        %v527 = vshrl.u32 %v526, 7
        %v528 = vsub.s32 %v525, %v527
        %v529 = vrot.slane %v513, %v528
        %v531 = vunpack.c.l.s4 1966171168
        %v532 = vunpack.c.0.s8 %v531
        %v533 = vlaneseq
        %v534 = vshrl.u32 %v533, 7
        %v535 = vsub.s32 %v532, %v534
        %v536 = vrot.slane %v520, %v535
        %v538 = vunpack.c.l.s4 1966171168
        %v539 = vunpack.c.0.s8 %v538
        %v540 = vlaneseq
        %v541 = vshrl.u32 %v540, 7
        %v542 = vsub.s32 %v539, %v541
        %v543 = vrot.slane %v521, %v542
        %v545 = vunpack.c.l.s4 1966171168
        %v546 = vunpack.c.0.s8 %v545
        %v547 = vlaneseq
        %v548 = vshrl.u32 %v547, 7
        %v549 = vsub.s32 %v546, %v548
        %v550 = vrot.slane %v522, %v549
        %v551 = vcombine.high %v529, %v529
        %v552 = vcombine.high %v536, %v536
        %v553 = vcombine.high %v543, %v543
        %v554 = vcombine.high %v550, %v550
        %v555 = vlaneseq
        %v556 = vshrl.u32 %v555, 7
        %v557 = vsub.s32 0, %v556
        %v558 = vrot.slane %v480, %v557
        %v559 = vlaneseq
        %v560 = vshrl.u32 %v559, 7
        %v561 = vsub.s32 0, %v560
        %v562 = vrot.slane %v494, %v561
        %v563 = vlaneseq
        %v564 = vshrl.u32 %v563, 7
        %v565 = vsub.s32 0, %v564
        %v566 = vrot.slane %v502, %v565
        %v567 = vlaneseq
        %v568 = vshrl.u32 %v567, 7
        %v569 = vsub.s32 0, %v568
        %v570 = vrot.slane %v504, %v569
        %v571 = vlaneseq
        %v572 = vshrl.u32 %v571, 7
        %v573 = vsub.s32 0, %v572
        %v574 = vrot.slane %v487, %v573
        %v575 = vlaneseq
        %v576 = vshrl.u32 %v575, 7
        %v577 = vsub.s32 0, %v576
        %v578 = vrot.slane %v501, %v577
        %v579 = vlaneseq
        %v580 = vshrl.u32 %v579, 7
        %v581 = vsub.s32 0, %v580
        %v582 = vrot.slane %v503, %v581
        %v583 = vlaneseq
        %v584 = vshrl.u32 %v583, 7
        %v585 = vsub.s32 0, %v584
        %v586 = vrot.slane %v505, %v585
        %v587 = vlaneseq
        %v588 = vshrl.u32 %v587, 7
        %v589 = vsub.s32 0, %v588
        %v590 = vrot.slane %v529, %v589
        %v591 = vlaneseq
        %v592 = vshrl.u32 %v591, 7
        %v593 = vsub.s32 0, %v592
        %v594 = vrot.slane %v543, %v593
        %v595 = vlaneseq
        %v596 = vshrl.u32 %v595, 7
        %v597 = vsub.s32 0, %v596
        %v598 = vrot.slane %v551, %v597
        %v599 = vlaneseq
        %v600 = vshrl.u32 %v599, 7
        %v601 = vsub.s32 0, %v600
        %v602 = vrot.slane %v553, %v601
        %v603 = vlaneseq
        %v604 = vshrl.u32 %v603, 7
        %v605 = vsub.s32 0, %v604
        %v606 = vrot.slane %v536, %v605
        %v607 = vlaneseq
        %v608 = vshrl.u32 %v607, 7
        %v609 = vsub.s32 0, %v608
        %v610 = vrot.slane %v550, %v609
        %v611 = vlaneseq
        %v612 = vshrl.u32 %v611, 7
        %v613 = vsub.s32 0, %v612
        %v614 = vrot.slane %v552, %v613
        %v615 = vlaneseq
        %v616 = vshrl.u32 %v615, 7
        %v617 = vsub.s32 0, %v616
        %v618 = vrot.slane %v554, %v617
        %v635 = vmul.f32 %v558, %v439
        %v636 = vmul.f32 %v562, %v440
        %v637 = vmul.f32 %v566, %v441
        %v638 = vmul.f32 %v570, %v442
        %v639 = vmul.f32 %v574, %v443
        %v640 = vmul.f32 %v578, %v444
        %v641 = vmul.f32 %v582, %v445
        %v642 = vmul.f32 %v586, %v446
        %v643 = vmul.f32 %v590, %v447
        %v644 = vmul.f32 %v594, %v448
        %v645 = vmul.f32 %v598, %v449
        %v646 = vmul.f32 %v602, %v450
        %v647 = vmul.f32 %v606, %v451
        %v648 = vmul.f32 %v610, %v452
        %v649 = vmul.f32 %v614, %v453
        %v650 = vmul.f32 %v618, %v454
        %v651 = vld [vmem:[#allocation7] sm:$0xff]
        %v652 = vld [vmem:[#allocation7 + $0x8] sm:$0xff]
        %v653 = vld [vmem:[#allocation7 + $0x10] sm:$0xff]
        %v654 = vld [vmem:[#allocation7 + $0x18] sm:$0xff]
        %v655 = vld [vmem:[%s3] sm:$0x1]
        %v657 = vlaneseq
        %v658 = vshrl.u32 %v657, 7
        %v659 = vsub.s32 0, %v658
        %v660 = vrot.slane %v655, %v659
        %vm662 = vcmask 261120
        %v664 = vsel %vm662, %v635, 0
        %v667 = vsel %vm662, %v636, 0
        %v670 = vsel %vm662, %v637, 0
        %v673 = vsel %vm662, %v638, 0
        %v676 = vsel %vm662, %v639, 0
        %v679 = vsel %vm662, %v640, 0
        %v682 = vsel %vm662, %v641, 0
        %v685 = vsel %vm662, %v642, 0
        %v688 = vsel %vm662, %v643, 0
        %v691 = vsel %vm662, %v644, 0
        %v694 = vsel %vm662, %v645, 0
        %v697 = vsel %vm662, %v646, 0
        %v700 = vsel %vm662, %v647, 0
        %v703 = vsel %vm662, %v648, 0
        %v706 = vsel %vm662, %v649, 0
        %v709 = vsel %vm662, %v650, 0
        %711 = vmatprep.subr.mxu0 0.0
        %712 = vmatpush1.msra.mxu0 0.0
        %713 = vmatprep.subr.mxu0 0.0
        %714 = vmatpush1.msra.mxu0 0.0
        %715 = vmatprep.subr.mxu0 0.0
        %716 = vmatpush1.msra.mxu0 0.0
        %717 = vmatprep.subr.mxu0 0.0
        %718 = vmatpush1.msra.mxu0 0.0
        %719 = vmatprep.subr.mxu0 0.0
        %720 = vmatpush1.msra.mxu0 0.0
        %721 = vmatprep.subr.mxu0 0.0
        %722 = vmatpush1.msra.mxu0 0.0
        %723 = vmatprep.subr.mxu0 0.0
        %724 = vmatpush1.msra.mxu0 0.0
        %725 = vmatprep.subr.mxu0 0.0
        %726 = vmatpush1.msra.mxu0 0.0
        %727 = vmatprep.subr.mxu0 0.0
        %728 = vmatpush1.msra.mxu0 0.0
        %729 = vmatprep.subr.mxu0 0.0
        %730 = vmatpush1.msra.mxu0 0.0
        %731 = vmatprep.subr.mxu0 0.0
        %732 = vmatpush1.msra.mxu0 0.0
        %733 = vmatprep.subr.mxu0 0.0
        %734 = vmatpush1.msra.mxu0 0.0
        %735 = vmatprep.subr.mxu0 0.0
        %736 = vmatpush1.msra.mxu0 %v654
        %737 = vmatprep.subr.mxu0 0.0
        %738 = vmatpush1.msra.mxu0 %v653
        %739 = vmatprep.subr.mxu0 0.0
        %740 = vmatpush1.msra.mxu0 %v652
        %741 = vmatprep.subr.mxu0 0.0
        %742 = vmatpush1.msra.mxu0 %v651
        %743 = vmatprep.subr.mxu0 0.0
        %744 = vmatpush2.msra.mxu0 0.0
        %745 = vmatprep.subr.mxu0 0.0
        %746 = vmatpush2.msra.mxu0 0.0
        %747 = vmatprep.subr.mxu0 0.0
        %748 = vmatpush2.msra.mxu0 0.0
        %749 = vmatprep.subr.mxu0 0.0
        %750 = vmatpush2.msra.mxu0 0.0
        %751 = vmatprep.subr.mxu0 0.0
        %752 = vmatpush2.msra.mxu0 0.0
        %753 = vmatprep.subr.mxu0 0.0
        %754 = vmatpush2.msra.mxu0 0.0
        %755 = vmatprep.subr.mxu0 0.0
        %756 = vmatpush2.msra.mxu0 0.0
        %757 = vmatprep.subr.mxu0 0.0
        %758 = vmatpush2.msra.mxu0 0.0
        %759 = vmatprep.subr.mxu0 0.0
        %760 = vmatpush2.msra.mxu0 0.0
        %761 = vmatprep.subr.mxu0 0.0
        %762 = vmatpush2.msra.mxu0 0.0
        %763 = vmatprep.subr.mxu0 0.0
        %764 = vmatpush2.msra.mxu0 0.0
        %765 = vmatprep.subr.mxu0 0.0
        %766 = vmatpush2.msra.mxu0 0.0
        %767 = vmatprep.subr.mxu0 0.0
        %768 = vmatpush2.msra.mxu0 0.0
        %769 = vmatprep.subr.mxu0 0.0
        %770 = vmatpush2.msra.mxu0 0.0
        %771 = vmatprep.subr.mxu0 0.0
        %772 = vmatpush2.msra.mxu0 0.0
        %773 = vmatprep.subr.mxu0 0.0
        %774 = vmatpush2.msra.mxu0 0.0
        %775 = vmatprep.mubr.f32.mxu0 0.0
        %776 = vmatmul.mubr.f32.gmra.mxu0 %v664
        %v777 = vpop.f32.mrf.mxu0
        %v778 = vadd.f32 %v660, %v777
        %v779 = vpop.f32.mrf.mxu0
        %780 = vmatprep.mubr.f32.mxu0 0.0
        %781 = vmatmul.mubr.f32.gmra.mxu0 %v667
        %v782 = vpop.f32.mrf.mxu0
        %v783 = vadd.f32 %v660, %v782
        %v784 = vpop.f32.mrf.mxu0
        %785 = vmatprep.mubr.f32.mxu0 0.0
        %786 = vmatmul.mubr.f32.gmra.mxu0 %v670
        %v787 = vpop.f32.mrf.mxu0
        %v788 = vadd.f32 %v660, %v787
        %v789 = vpop.f32.mrf.mxu0
        %790 = vmatprep.mubr.f32.mxu0 0.0
        %791 = vmatmul.mubr.f32.gmra.mxu0 %v673
        %v792 = vpop.f32.mrf.mxu0
        %v793 = vadd.f32 %v660, %v792
        %v794 = vpop.f32.mrf.mxu0
        %795 = vmatprep.mubr.f32.mxu0 0.0
        %796 = vmatmul.mubr.f32.gmra.mxu0 %v676
        %v797 = vpop.f32.mrf.mxu0
        %v798 = vadd.f32 %v660, %v797
        %v799 = vpop.f32.mrf.mxu0
        %800 = vmatprep.mubr.f32.mxu0 0.0
        %801 = vmatmul.mubr.f32.gmra.mxu0 %v679
        %v802 = vpop.f32.mrf.mxu0
        %v803 = vadd.f32 %v660, %v802
        %v804 = vpop.f32.mrf.mxu0
        %805 = vmatprep.mubr.f32.mxu0 0.0
        %806 = vmatmul.mubr.f32.gmra.mxu0 %v682
        %v807 = vpop.f32.mrf.mxu0
        %v808 = vadd.f32 %v660, %v807
        %v809 = vpop.f32.mrf.mxu0
        %810 = vmatprep.mubr.f32.mxu0 0.0
        %811 = vmatmul.mubr.f32.gmra.mxu0 %v685
        %v812 = vpop.f32.mrf.mxu0
        %v813 = vadd.f32 %v660, %v812
        %v814 = vpop.f32.mrf.mxu0
        %815 = vmatprep.mubr.f32.mxu0 0.0
        %816 = vmatmul.mubr.f32.gmra.mxu0 %v688
        %v817 = vpop.f32.mrf.mxu0
        %v818 = vadd.f32 %v660, %v817
        %v819 = vpop.f32.mrf.mxu0
        %820 = vmatprep.mubr.f32.mxu0 0.0
        %821 = vmatmul.mubr.f32.gmra.mxu0 %v691
        %v822 = vpop.f32.mrf.mxu0
        %v823 = vadd.f32 %v660, %v822
        %v824 = vpop.f32.mrf.mxu0
        %825 = vmatprep.mubr.f32.mxu0 0.0
        %826 = vmatmul.mubr.f32.gmra.mxu0 %v694
        %v827 = vpop.f32.mrf.mxu0
        %v828 = vadd.f32 %v660, %v827
        %v829 = vpop.f32.mrf.mxu0
        %830 = vmatprep.mubr.f32.mxu0 0.0
        %831 = vmatmul.mubr.f32.gmra.mxu0 %v697
        %v832 = vpop.f32.mrf.mxu0
        %v833 = vadd.f32 %v660, %v832
        %v834 = vpop.f32.mrf.mxu0
        %835 = vmatprep.mubr.f32.mxu0 0.0
        %836 = vmatmul.mubr.f32.gmra.mxu0 %v700
        %v837 = vpop.f32.mrf.mxu0
        %v838 = vadd.f32 %v660, %v837
        %v839 = vpop.f32.mrf.mxu0
        %840 = vmatprep.mubr.f32.mxu0 0.0
        %841 = vmatmul.mubr.f32.gmra.mxu0 %v703
        %v842 = vpop.f32.mrf.mxu0
        %v843 = vadd.f32 %v660, %v842
        %v844 = vpop.f32.mrf.mxu0
        %845 = vmatprep.mubr.f32.mxu0 0.0
        %846 = vmatmul.mubr.f32.gmra.mxu0 %v706
        %v847 = vpop.f32.mrf.mxu0
        %v848 = vadd.f32 %v660, %v847
        %v849 = vpop.f32.mrf.mxu0
        %850 = vmatprep.mubr.f32.mxu0 0.0
        %851 = vmatmul.mubr.f32.gmra.mxu0 %v709
        %v852 = vpop.f32.mrf.mxu0
        %v853 = vadd.f32 %v660, %v852
        %v854 = vpop.f32.mrf.mxu0
        %855 = vdwg.mxu0
        %vm856 = vcmp.ge.f32.partialorder %v778, 0.0
        %vm857 = vcmp.ge.f32.partialorder %v783, 0.0
        %vm858 = vcmp.ge.f32.partialorder %v788, 0.0
        %vm859 = vcmp.ge.f32.partialorder %v793, 0.0
        %vm860 = vcmp.ge.f32.partialorder %v798, 0.0
        %vm861 = vcmp.ge.f32.partialorder %v803, 0.0
        %vm862 = vcmp.ge.f32.partialorder %v808, 0.0
        %vm863 = vcmp.ge.f32.partialorder %v813, 0.0
        %vm864 = vcmp.ge.f32.partialorder %v818, 0.0
        %vm865 = vcmp.ge.f32.partialorder %v823, 0.0
        %vm866 = vcmp.ge.f32.partialorder %v828, 0.0
        %vm867 = vcmp.ge.f32.partialorder %v833, 0.0
        %vm868 = vcmp.ge.f32.partialorder %v838, 0.0
        %vm869 = vcmp.ge.f32.partialorder %v843, 0.0
        %vm870 = vcmp.ge.f32.partialorder %v848, 0.0
        %vm871 = vcmp.ge.f32.partialorder %v853, 0.0
        %v872 = vmul.f32 %v778, 0.01
        %v873 = vmul.f32 %v783, 0.01
        %v874 = vmul.f32 %v788, 0.01
        %v875 = vmul.f32 %v793, 0.01
        %v876 = vmul.f32 %v798, 0.01
        %v877 = vmul.f32 %v803, 0.01
        %v878 = vmul.f32 %v808, 0.01
        %v879 = vmul.f32 %v813, 0.01
        %v880 = vmul.f32 %v818, 0.01
        %v881 = vmul.f32 %v823, 0.01
        %v882 = vmul.f32 %v828, 0.01
        %v883 = vmul.f32 %v833, 0.01
        %v884 = vmul.f32 %v838, 0.01
        %v885 = vmul.f32 %v843, 0.01
        %v886 = vmul.f32 %v848, 0.01
        %v887 = vmul.f32 %v853, 0.01
        %v888 = vsel %vm856, %v778, %v872
        %v889 = vsel %vm857, %v783, %v873
        %v890 = vsel %vm858, %v788, %v874
        %v891 = vsel %vm859, %v793, %v875
        %v892 = vsel %vm860, %v798, %v876
        %v893 = vsel %vm861, %v803, %v877
        %v894 = vsel %vm862, %v808, %v878
        %v895 = vsel %vm863, %v813, %v879
        %v896 = vsel %vm864, %v818, %v880
        %v897 = vsel %vm865, %v823, %v881
        %v898 = vsel %vm866, %v828, %v882
        %v899 = vsel %vm867, %v833, %v883
        %v900 = vsel %vm868, %v838, %v884
        %v901 = vsel %vm869, %v843, %v885
        %v902 = vsel %vm870, %v848, %v886
        %v903 = vsel %vm871, %v853, %v887
        %v904 = vld [vmem:[#allocation8] sm:$0xff]
        %v905 = vld [vmem:[#allocation8 + $0x8] sm:$0xff]
        %v906 = vld [vmem:[#allocation8 + $0x10] sm:$0xff]
        %v907 = vld [vmem:[#allocation8 + $0x18] sm:$0xff]
        %v908 = vld [vmem:[%s6] sm:$0x1]
        %v910 = vlaneseq
        %v911 = vshrl.u32 %v910, 7
        %v912 = vsub.s32 0, %v911
        %v913 = vrot.slane %v908, %v912
        %915 = vmatprep.subr.mxu0 0.0
        %916 = vmatpush1.msra.mxu0 0.0
        %917 = vmatprep.subr.mxu0 0.0
        %918 = vmatpush1.msra.mxu0 0.0
        %919 = vmatprep.subr.mxu0 0.0
        %920 = vmatpush1.msra.mxu0 0.0
        %921 = vmatprep.subr.mxu0 0.0
        %922 = vmatpush1.msra.mxu0 0.0
        %923 = vmatprep.subr.mxu0 0.0
        %924 = vmatpush1.msra.mxu0 0.0
        %925 = vmatprep.subr.mxu0 0.0
        %926 = vmatpush1.msra.mxu0 0.0
        %927 = vmatprep.subr.mxu0 0.0
        %928 = vmatpush1.msra.mxu0 0.0
        %929 = vmatprep.subr.mxu0 0.0
        %930 = vmatpush1.msra.mxu0 0.0
        %931 = vmatprep.subr.mxu0 0.0
        %932 = vmatpush1.msra.mxu0 0.0
        %933 = vmatprep.subr.mxu0 0.0
        %934 = vmatpush1.msra.mxu0 0.0
        %935 = vmatprep.subr.mxu0 0.0
        %936 = vmatpush1.msra.mxu0 0.0
        %937 = vmatprep.subr.mxu0 0.0
        %938 = vmatpush1.msra.mxu0 0.0
        %939 = vmatprep.subr.mxu0 0.0
        %940 = vmatpush1.msra.mxu0 %v907
        %941 = vmatprep.subr.mxu0 0.0
        %942 = vmatpush1.msra.mxu0 %v906
        %943 = vmatprep.subr.mxu0 0.0
        %944 = vmatpush1.msra.mxu0 %v905
        %945 = vmatprep.subr.mxu0 0.0
        %946 = vmatpush1.msra.mxu0 %v904
        %947 = vmatprep.subr.mxu0 0.0
        %948 = vmatpush2.msra.mxu0 0.0
        %949 = vmatprep.subr.mxu0 0.0
        %950 = vmatpush2.msra.mxu0 0.0
        %951 = vmatprep.subr.mxu0 0.0
        %952 = vmatpush2.msra.mxu0 0.0
        %953 = vmatprep.subr.mxu0 0.0
        %954 = vmatpush2.msra.mxu0 0.0
        %955 = vmatprep.subr.mxu0 0.0
        %956 = vmatpush2.msra.mxu0 0.0
        %957 = vmatprep.subr.mxu0 0.0
        %958 = vmatpush2.msra.mxu0 0.0
        %959 = vmatprep.subr.mxu0 0.0
        %960 = vmatpush2.msra.mxu0 0.0
        %961 = vmatprep.subr.mxu0 0.0
        %962 = vmatpush2.msra.mxu0 0.0
        %963 = vmatprep.subr.mxu0 0.0
        %964 = vmatpush2.msra.mxu0 0.0
        %965 = vmatprep.subr.mxu0 0.0
        %966 = vmatpush2.msra.mxu0 0.0
        %967 = vmatprep.subr.mxu0 0.0
        %968 = vmatpush2.msra.mxu0 0.0
        %969 = vmatprep.subr.mxu0 0.0
        %970 = vmatpush2.msra.mxu0 0.0
        %971 = vmatprep.subr.mxu0 0.0
        %972 = vmatpush2.msra.mxu0 0.0
        %973 = vmatprep.subr.mxu0 0.0
        %974 = vmatpush2.msra.mxu0 0.0
        %975 = vmatprep.subr.mxu0 0.0
        %976 = vmatpush2.msra.mxu0 0.0
        %977 = vmatprep.subr.mxu0 0.0
        %978 = vmatpush2.msra.mxu0 0.0
        %979 = vmatprep.mubr.f32.mxu0 0.0
        %980 = vmatmul.mubr.f32.gmra.mxu0 %v664
        %v981 = vpop.f32.mrf.mxu0
        %v982 = vadd.f32 %v913, %v981
        %v983 = vpop.f32.mrf.mxu0
        %984 = vmatprep.mubr.f32.mxu0 0.0
        %985 = vmatmul.mubr.f32.gmra.mxu0 %v667
        %v986 = vpop.f32.mrf.mxu0
        %v987 = vadd.f32 %v913, %v986
        %v988 = vpop.f32.mrf.mxu0
        %989 = vmatprep.mubr.f32.mxu0 0.0
        %990 = vmatmul.mubr.f32.gmra.mxu0 %v670
        %v991 = vpop.f32.mrf.mxu0
        %v992 = vadd.f32 %v913, %v991
        %v993 = vpop.f32.mrf.mxu0
        %994 = vmatprep.mubr.f32.mxu0 0.0
        %995 = vmatmul.mubr.f32.gmra.mxu0 %v673
        %v996 = vpop.f32.mrf.mxu0
        %v997 = vadd.f32 %v913, %v996
        %v998 = vpop.f32.mrf.mxu0
        %999 = vmatprep.mubr.f32.mxu0 0.0
        %1000 = vmatmul.mubr.f32.gmra.mxu0 %v676
        %v1001 = vpop.f32.mrf.mxu0
        %v1002 = vadd.f32 %v913, %v1001
        %v1003 = vpop.f32.mrf.mxu0
        %1004 = vmatprep.mubr.f32.mxu0 0.0
        %1005 = vmatmul.mubr.f32.gmra.mxu0 %v679
        %v1006 = vpop.f32.mrf.mxu0
        %v1007 = vadd.f32 %v913, %v1006
        %v1008 = vpop.f32.mrf.mxu0
        %1009 = vmatprep.mubr.f32.mxu0 0.0
        %1010 = vmatmul.mubr.f32.gmra.mxu0 %v682
        %v1011 = vpop.f32.mrf.mxu0
        %v1012 = vadd.f32 %v913, %v1011
        %v1013 = vpop.f32.mrf.mxu0
        %1014 = vmatprep.mubr.f32.mxu0 0.0
        %1015 = vmatmul.mubr.f32.gmra.mxu0 %v685
        %v1016 = vpop.f32.mrf.mxu0
        %v1017 = vadd.f32 %v913, %v1016
        %v1018 = vpop.f32.mrf.mxu0
        %1019 = vmatprep.mubr.f32.mxu0 0.0
        %1020 = vmatmul.mubr.f32.gmra.mxu0 %v688
        %v1021 = vpop.f32.mrf.mxu0
        %v1022 = vadd.f32 %v913, %v1021
        %v1023 = vpop.f32.mrf.mxu0
        %1024 = vmatprep.mubr.f32.mxu0 0.0
        %1025 = vmatmul.mubr.f32.gmra.mxu0 %v691
        %v1026 = vpop.f32.mrf.mxu0
        %v1027 = vadd.f32 %v913, %v1026
        %v1028 = vpop.f32.mrf.mxu0
        %1029 = vmatprep.mubr.f32.mxu0 0.0
        %1030 = vmatmul.mubr.f32.gmra.mxu0 %v694
        %v1031 = vpop.f32.mrf.mxu0
        %v1032 = vadd.f32 %v913, %v1031
        %v1033 = vpop.f32.mrf.mxu0
        %1034 = vmatprep.mubr.f32.mxu0 0.0
        %1035 = vmatmul.mubr.f32.gmra.mxu0 %v697
        %v1036 = vpop.f32.mrf.mxu0
        %v1037 = vadd.f32 %v913, %v1036
        %v1038 = vpop.f32.mrf.mxu0
        %1039 = vmatprep.mubr.f32.mxu0 0.0
        %1040 = vmatmul.mubr.f32.gmra.mxu0 %v700
        %v1041 = vpop.f32.mrf.mxu0
        %v1042 = vadd.f32 %v913, %v1041
        %v1043 = vpop.f32.mrf.mxu0
        %1044 = vmatprep.mubr.f32.mxu0 0.0
        %1045 = vmatmul.mubr.f32.gmra.mxu0 %v703
        %v1046 = vpop.f32.mrf.mxu0
        %v1047 = vadd.f32 %v913, %v1046
        %v1048 = vpop.f32.mrf.mxu0
        %1049 = vmatprep.mubr.f32.mxu0 0.0
        %1050 = vmatmul.mubr.f32.gmra.mxu0 %v706
        %v1051 = vpop.f32.mrf.mxu0
        %v1052 = vadd.f32 %v913, %v1051
        %v1053 = vpop.f32.mrf.mxu0
        %1054 = vmatprep.mubr.f32.mxu0 0.0
        %1055 = vmatmul.mubr.f32.gmra.mxu0 %v709
        %v1056 = vpop.f32.mrf.mxu0
        %v1057 = vadd.f32 %v913, %v1056
        %v1058 = vpop.f32.mrf.mxu0
        %1059 = vdwg.mxu0
        %v1060 = vld [vmem:[%s4] sm:$0x1]
        %v1062 = vlaneseq
        %v1063 = vshrl.u32 %v1062, 7
        %v1064 = vsub.s32 0, %v1063
        %v1065 = vrot.slane %v1060, %v1064
        %v1067 = vmul.f32 %v888, %v1065
        %v1068 = vmul.f32 %v889, %v1065
        %v1069 = vmul.f32 %v890, %v1065
        %v1070 = vmul.f32 %v891, %v1065
        %v1071 = vmul.f32 %v892, %v1065
        %v1072 = vmul.f32 %v893, %v1065
        %v1073 = vmul.f32 %v894, %v1065
        %v1074 = vmul.f32 %v895, %v1065
        %v1075 = vmul.f32 %v896, %v1065
        %v1076 = vmul.f32 %v897, %v1065
        %v1077 = vmul.f32 %v898, %v1065
        %v1078 = vmul.f32 %v899, %v1065
        %v1079 = vmul.f32 %v900, %v1065
        %v1080 = vmul.f32 %v901, %v1065
        %v1081 = vmul.f32 %v902, %v1065
        %v1082 = vmul.f32 %v903, %v1065
        %v1083 = vsel %vm662, %v1067, 0.0
        %1084 = vadd.xlane.f32.xlu0 %v1083
        %v1085 = vpop.xlane.xlu0 %1084
        %v1086 = vsel %vm662, %v1068, 0.0
        %1087 = vadd.xlane.f32.xlu0 %v1086
        %v1088 = vpop.xlane.xlu0 %1087
        %v1089 = vsel %vm662, %v1069, 0.0
        %1090 = vadd.xlane.f32.xlu0 %v1089
        %v1091 = vpop.xlane.xlu0 %1090
        %v1092 = vsel %vm662, %v1070, 0.0
        %1093 = vadd.xlane.f32.xlu0 %v1092
        %v1094 = vpop.xlane.xlu0 %1093
        %v1095 = vsel %vm662, %v1071, 0.0
        %1096 = vadd.xlane.f32.xlu0 %v1095
        %v1097 = vpop.xlane.xlu0 %1096
        %v1098 = vsel %vm662, %v1072, 0.0
        %1099 = vadd.xlane.f32.xlu0 %v1098
        %v1100 = vpop.xlane.xlu0 %1099
        %v1101 = vsel %vm662, %v1073, 0.0
        %1102 = vadd.xlane.f32.xlu0 %v1101
        %v1103 = vpop.xlane.xlu0 %1102
        %v1104 = vsel %vm662, %v1074, 0.0
        %1105 = vadd.xlane.f32.xlu0 %v1104
        %v1106 = vpop.xlane.xlu0 %1105
        %v1107 = vsel %vm662, %v1075, 0.0
        %1108 = vadd.xlane.f32.xlu0 %v1107
        %v1109 = vpop.xlane.xlu0 %1108
        %v1110 = vsel %vm662, %v1076, 0.0
        %1111 = vadd.xlane.f32.xlu0 %v1110
        %v1112 = vpop.xlane.xlu0 %1111
        %v1113 = vsel %vm662, %v1077, 0.0
        %1114 = vadd.xlane.f32.xlu0 %v1113
        %v1115 = vpop.xlane.xlu0 %1114
        %v1116 = vsel %vm662, %v1078, 0.0
        %1117 = vadd.xlane.f32.xlu0 %v1116
        %v1118 = vpop.xlane.xlu0 %1117
        %v1119 = vsel %vm662, %v1079, 0.0
        %1120 = vadd.xlane.f32.xlu0 %v1119
        %v1121 = vpop.xlane.xlu0 %1120
        %v1122 = vsel %vm662, %v1080, 0.0
        %1123 = vadd.xlane.f32.xlu0 %v1122
        %v1124 = vpop.xlane.xlu0 %1123
        %v1125 = vsel %vm662, %v1081, 0.0
        %1126 = vadd.xlane.f32.xlu0 %v1125
        %v1127 = vpop.xlane.xlu0 %1126
        %v1128 = vsel %vm662, %v1082, 0.0
        %1129 = vadd.xlane.f32.xlu0 %v1128
        %v1130 = vpop.xlane.xlu0 %1129
        %v1131 = vrot.slane %v1085, 4
        %v1132 = vmax.f32 %v1085, %v1131
        %v1133 = vrot.slane %v1132, 2
        %v1134 = vmax.f32 %v1132, %v1133
        %v1135 = vrot.slane %v1134, 1
        %v1136 = vmax.f32 %v1134, %v1135
        %v1137 = vrot.slane %v1088, 4
        %v1138 = vmax.f32 %v1088, %v1137
        %v1139 = vrot.slane %v1138, 2
        %v1140 = vmax.f32 %v1138, %v1139
        %v1141 = vrot.slane %v1140, 1
        %v1142 = vmax.f32 %v1140, %v1141
        %v1143 = vrot.slane %v1091, 4
        %v1144 = vmax.f32 %v1091, %v1143
        %v1145 = vrot.slane %v1144, 2
        %v1146 = vmax.f32 %v1144, %v1145
        %v1147 = vrot.slane %v1146, 1
        %v1148 = vmax.f32 %v1146, %v1147
        %v1149 = vrot.slane %v1094, 4
        %v1150 = vmax.f32 %v1094, %v1149
        %v1151 = vrot.slane %v1150, 2
        %v1152 = vmax.f32 %v1150, %v1151
        %v1153 = vrot.slane %v1152, 1
        %v1154 = vmax.f32 %v1152, %v1153
        %v1155 = vrot.slane %v1097, 4
        %v1156 = vmax.f32 %v1097, %v1155
        %v1157 = vrot.slane %v1156, 2
        %v1158 = vmax.f32 %v1156, %v1157
        %v1159 = vrot.slane %v1158, 1
        %v1160 = vmax.f32 %v1158, %v1159
        %v1161 = vrot.slane %v1100, 4
        %v1162 = vmax.f32 %v1100, %v1161
        %v1163 = vrot.slane %v1162, 2
        %v1164 = vmax.f32 %v1162, %v1163
        %v1165 = vrot.slane %v1164, 1
        %v1166 = vmax.f32 %v1164, %v1165
        %v1167 = vrot.slane %v1103, 4
        %v1168 = vmax.f32 %v1103, %v1167
        %v1169 = vrot.slane %v1168, 2
        %v1170 = vmax.f32 %v1168, %v1169
        %v1171 = vrot.slane %v1170, 1
        %v1172 = vmax.f32 %v1170, %v1171
        %v1173 = vrot.slane %v1106, 4
        %v1174 = vmax.f32 %v1106, %v1173
        %v1175 = vrot.slane %v1174, 2
        %v1176 = vmax.f32 %v1174, %v1175
        %v1177 = vrot.slane %v1176, 1
        %v1178 = vmax.f32 %v1176, %v1177
        %v1179 = vrot.slane %v1109, 4
        %v1180 = vmax.f32 %v1109, %v1179
        %v1181 = vrot.slane %v1180, 2
        %v1182 = vmax.f32 %v1180, %v1181
        %v1183 = vrot.slane %v1182, 1
        %v1184 = vmax.f32 %v1182, %v1183
        %v1185 = vrot.slane %v1112, 4
        %v1186 = vmax.f32 %v1112, %v1185
        %v1187 = vrot.slane %v1186, 2
        %v1188 = vmax.f32 %v1186, %v1187
        %v1189 = vrot.slane %v1188, 1
        %v1190 = vmax.f32 %v1188, %v1189
        %v1191 = vrot.slane %v1115, 4
        %v1192 = vmax.f32 %v1115, %v1191
        %v1193 = vrot.slane %v1192, 2
        %v1194 = vmax.f32 %v1192, %v1193
        %v1195 = vrot.slane %v1194, 1
        %v1196 = vmax.f32 %v1194, %v1195
        %v1197 = vrot.slane %v1118, 4
        %v1198 = vmax.f32 %v1118, %v1197
        %v1199 = vrot.slane %v1198, 2
        %v1200 = vmax.f32 %v1198, %v1199
        %v1201 = vrot.slane %v1200, 1
        %v1202 = vmax.f32 %v1200, %v1201
        %v1203 = vrot.slane %v1121, 4
        %v1204 = vmax.f32 %v1121, %v1203
        %v1205 = vrot.slane %v1204, 2
        %v1206 = vmax.f32 %v1204, %v1205
        %v1207 = vrot.slane %v1206, 1
        %v1208 = vmax.f32 %v1206, %v1207
        %v1209 = vrot.slane %v1124, 4
        %v1210 = vmax.f32 %v1124, %v1209
        %v1211 = vrot.slane %v1210, 2
        %v1212 = vmax.f32 %v1210, %v1211
        %v1213 = vrot.slane %v1212, 1
        %v1214 = vmax.f32 %v1212, %v1213
        %v1215 = vrot.slane %v1127, 4
        %v1216 = vmax.f32 %v1127, %v1215
        %v1217 = vrot.slane %v1216, 2
        %v1218 = vmax.f32 %v1216, %v1217
        %v1219 = vrot.slane %v1218, 1
        %v1220 = vmax.f32 %v1218, %v1219
        %v1221 = vrot.slane %v1130, 4
        %v1222 = vmax.f32 %v1130, %v1221
        %v1223 = vrot.slane %v1222, 2
        %v1224 = vmax.f32 %v1222, %v1223
        %v1225 = vrot.slane %v1224, 1
        %v1226 = vmax.f32 %v1224, %v1225
        %v1227 = vsub.f32 %v1085, %v1136
        %v1228 = vsub.f32 %v1088, %v1142
        %v1229 = vsub.f32 %v1091, %v1148
        %v1230 = vsub.f32 %v1094, %v1154
        %v1231 = vsub.f32 %v1097, %v1160
        %v1232 = vsub.f32 %v1100, %v1166
        %v1233 = vsub.f32 %v1103, %v1172
        %v1234 = vsub.f32 %v1106, %v1178
        %v1235 = vsub.f32 %v1109, %v1184
        %v1236 = vsub.f32 %v1112, %v1190
        %v1237 = vsub.f32 %v1115, %v1196
        %v1238 = vsub.f32 %v1118, %v1202
        %v1239 = vsub.f32 %v1121, %v1208
        %v1240 = vsub.f32 %v1124, %v1214
        %v1241 = vsub.f32 %v1127, %v1220
        %v1242 = vsub.f32 %v1130, %v1226
        %v1243 = vmul.f32 %v1227, 1.442695
        %v1244 = vpow.pop %v1243
        %v1245 = vmul.f32 %v1228, 1.442695
        %v1246 = vpow.pop %v1245
        %v1247 = vmul.f32 %v1229, 1.442695
        %v1248 = vpow.pop %v1247
        %v1249 = vmul.f32 %v1230, 1.442695
        %v1250 = vpow.pop %v1249
        %v1251 = vmul.f32 %v1231, 1.442695
        %v1252 = vpow.pop %v1251
        %v1253 = vmul.f32 %v1232, 1.442695
        %v1254 = vpow.pop %v1253
        %v1255 = vmul.f32 %v1233, 1.442695
        %v1256 = vpow.pop %v1255
        %v1257 = vmul.f32 %v1234, 1.442695
        %v1258 = vpow.pop %v1257
        %v1259 = vmul.f32 %v1235, 1.442695
        %v1260 = vpow.pop %v1259
        %v1261 = vmul.f32 %v1236, 1.442695
        %v1262 = vpow.pop %v1261
        %v1263 = vmul.f32 %v1237, 1.442695
        %v1264 = vpow.pop %v1263
        %v1265 = vmul.f32 %v1238, 1.442695
        %v1266 = vpow.pop %v1265
        %v1267 = vmul.f32 %v1239, 1.442695
        %v1268 = vpow.pop %v1267
        %v1269 = vmul.f32 %v1240, 1.442695
        %v1270 = vpow.pop %v1269
        %v1271 = vmul.f32 %v1241, 1.442695
        %v1272 = vpow.pop %v1271
        %v1273 = vmul.f32 %v1242, 1.442695
        %v1274 = vpow.pop %v1273
        %v1275 = vrot.slane %v1244, 4
        %v1276 = vadd.f32 %v1244, %v1275
        %v1277 = vrot.slane %v1276, 2
        %v1278 = vadd.f32 %v1276, %v1277
        %v1279 = vrot.slane %v1278, 1
        %v1280 = vadd.f32 %v1278, %v1279
        %v1281 = vrot.slane %v1246, 4
        %v1282 = vadd.f32 %v1246, %v1281
        %v1283 = vrot.slane %v1282, 2
        %v1284 = vadd.f32 %v1282, %v1283
        %v1285 = vrot.slane %v1284, 1
        %v1286 = vadd.f32 %v1284, %v1285
        %v1287 = vrot.slane %v1248, 4
        %v1288 = vadd.f32 %v1248, %v1287
        %v1289 = vrot.slane %v1288, 2
        %v1290 = vadd.f32 %v1288, %v1289
        %v1291 = vrot.slane %v1290, 1
        %v1292 = vadd.f32 %v1290, %v1291
        %v1293 = vrot.slane %v1250, 4
        %v1294 = vadd.f32 %v1250, %v1293
        %v1295 = vrot.slane %v1294, 2
        %v1296 = vadd.f32 %v1294, %v1295
        %v1297 = vrot.slane %v1296, 1
        %v1298 = vadd.f32 %v1296, %v1297
        %v1299 = vrot.slane %v1252, 4
        %v1300 = vadd.f32 %v1252, %v1299
        %v1301 = vrot.slane %v1300, 2
        %v1302 = vadd.f32 %v1300, %v1301
        %v1303 = vrot.slane %v1302, 1
        %v1304 = vadd.f32 %v1302, %v1303
        %v1305 = vrot.slane %v1254, 4
        %v1306 = vadd.f32 %v1254, %v1305
        %v1307 = vrot.slane %v1306, 2
        %v1308 = vadd.f32 %v1306, %v1307
        %v1309 = vrot.slane %v1308, 1
        %v1310 = vadd.f32 %v1308, %v1309
        %v1311 = vrot.slane %v1256, 4
        %v1312 = vadd.f32 %v1256, %v1311
        %v1313 = vrot.slane %v1312, 2
        %v1314 = vadd.f32 %v1312, %v1313
        %v1315 = vrot.slane %v1314, 1
        %v1316 = vadd.f32 %v1314, %v1315
        %v1317 = vrot.slane %v1258, 4
        %v1318 = vadd.f32 %v1258, %v1317
        %v1319 = vrot.slane %v1318, 2
        %v1320 = vadd.f32 %v1318, %v1319
        %v1321 = vrot.slane %v1320, 1
        %v1322 = vadd.f32 %v1320, %v1321
        %v1323 = vrot.slane %v1260, 4
        %v1324 = vadd.f32 %v1260, %v1323
        %v1325 = vrot.slane %v1324, 2
        %v1326 = vadd.f32 %v1324, %v1325
        %v1327 = vrot.slane %v1326, 1
        %v1328 = vadd.f32 %v1326, %v1327
        %v1329 = vrot.slane %v1262, 4
        %v1330 = vadd.f32 %v1262, %v1329
        %v1331 = vrot.slane %v1330, 2
        %v1332 = vadd.f32 %v1330, %v1331
        %v1333 = vrot.slane %v1332, 1
        %v1334 = vadd.f32 %v1332, %v1333
        %v1335 = vrot.slane %v1264, 4
        %v1336 = vadd.f32 %v1264, %v1335
        %v1337 = vrot.slane %v1336, 2
        %v1338 = vadd.f32 %v1336, %v1337
        %v1339 = vrot.slane %v1338, 1
        %v1340 = vadd.f32 %v1338, %v1339
        %v1341 = vrot.slane %v1266, 4
        %v1342 = vadd.f32 %v1266, %v1341
        %v1343 = vrot.slane %v1342, 2
        %v1344 = vadd.f32 %v1342, %v1343
        %v1345 = vrot.slane %v1344, 1
        %v1346 = vadd.f32 %v1344, %v1345
        %v1347 = vrot.slane %v1268, 4
        %v1348 = vadd.f32 %v1268, %v1347
        %v1349 = vrot.slane %v1348, 2
        %v1350 = vadd.f32 %v1348, %v1349
        %v1351 = vrot.slane %v1350, 1
        %v1352 = vadd.f32 %v1350, %v1351
        %v1353 = vrot.slane %v1270, 4
        %v1354 = vadd.f32 %v1270, %v1353
        %v1355 = vrot.slane %v1354, 2
        %v1356 = vadd.f32 %v1354, %v1355
        %v1357 = vrot.slane %v1356, 1
        %v1358 = vadd.f32 %v1356, %v1357
        %v1359 = vrot.slane %v1272, 4
        %v1360 = vadd.f32 %v1272, %v1359
        %v1361 = vrot.slane %v1360, 2
        %v1362 = vadd.f32 %v1360, %v1361
        %v1363 = vrot.slane %v1362, 1
        %v1364 = vadd.f32 %v1362, %v1363
        %v1365 = vrot.slane %v1274, 4
        %v1366 = vadd.f32 %v1274, %v1365
        %v1367 = vrot.slane %v1366, 2
        %v1368 = vadd.f32 %v1366, %v1367
        %v1369 = vrot.slane %v1368, 1
        %v1370 = vadd.f32 %v1368, %v1369
        %v1371 = vrcp.pop %v1280
        %v1372 = vrcp.pop %v1286
        %v1373 = vrcp.pop %v1292
        %v1374 = vrcp.pop %v1298
        %v1375 = vrcp.pop %v1304
        %v1376 = vrcp.pop %v1310
        %v1377 = vrcp.pop %v1316
        %v1378 = vrcp.pop %v1322
        %v1379 = vrcp.pop %v1328
        %v1380 = vrcp.pop %v1334
        %v1381 = vrcp.pop %v1340
        %v1382 = vrcp.pop %v1346
        %v1383 = vrcp.pop %v1352
        %v1384 = vrcp.pop %v1358
        %v1385 = vrcp.pop %v1364
        %v1386 = vrcp.pop %v1370
        %v1387 = vmul.f32 %v1244, %v1371
        %v1388 = vmul.f32 %v1246, %v1372
        %v1389 = vmul.f32 %v1248, %v1373
        %v1390 = vmul.f32 %v1250, %v1374
        %v1391 = vmul.f32 %v1252, %v1375
        %v1392 = vmul.f32 %v1254, %v1376
        %v1393 = vmul.f32 %v1256, %v1377
        %v1394 = vmul.f32 %v1258, %v1378
        %v1395 = vmul.f32 %v1260, %v1379
        %v1396 = vmul.f32 %v1262, %v1380
        %v1397 = vmul.f32 %v1264, %v1381
        %v1398 = vmul.f32 %v1266, %v1382
        %v1399 = vmul.f32 %v1268, %v1383
        %v1400 = vmul.f32 %v1270, %v1384
        %v1401 = vmul.f32 %v1272, %v1385
        %v1402 = vmul.f32 %v1274, %v1386
        %v1403 = vmul.f32 %v1387, %v982
        %v1404 = vmul.f32 %v1388, %v987
        %v1405 = vmul.f32 %v1389, %v992
        %v1406 = vmul.f32 %v1390, %v997
        %v1407 = vmul.f32 %v1391, %v1002
        %v1408 = vmul.f32 %v1392, %v1007
        %v1409 = vmul.f32 %v1393, %v1012
        %v1410 = vmul.f32 %v1394, %v1017
        %v1411 = vmul.f32 %v1395, %v1022
        %v1412 = vmul.f32 %v1396, %v1027
        %v1413 = vmul.f32 %v1397, %v1032
        %v1414 = vmul.f32 %v1398, %v1037
        %v1415 = vmul.f32 %v1399, %v1042
        %v1416 = vmul.f32 %v1400, %v1047
        %v1417 = vmul.f32 %v1401, %v1052
        %v1418 = vmul.f32 %v1402, %v1057
        %v1419 = vsel %vm662, %v1403, 0.0
        %v1420 = vrot.slane %v1419, 4
        %v1421 = vadd.f32 %v1419, %v1420
        %v1422 = vrot.slane %v1421, 2
        %v1423 = vadd.f32 %v1421, %v1422
        %v1424 = vrot.slane %v1423, 1
        %v1425 = vadd.f32 %v1423, %v1424
        %v1426 = vsel %vm662, %v1404, 0.0
        %v1427 = vrot.slane %v1426, 4
        %v1428 = vadd.f32 %v1426, %v1427
        %v1429 = vrot.slane %v1428, 2
        %v1430 = vadd.f32 %v1428, %v1429
        %v1431 = vrot.slane %v1430, 1
        %v1432 = vadd.f32 %v1430, %v1431
        %v1433 = vsel %vm662, %v1405, 0.0
        %v1434 = vrot.slane %v1433, 4
        %v1435 = vadd.f32 %v1433, %v1434
        %v1436 = vrot.slane %v1435, 2
        %v1437 = vadd.f32 %v1435, %v1436
        %v1438 = vrot.slane %v1437, 1
        %v1439 = vadd.f32 %v1437, %v1438
        %v1440 = vsel %vm662, %v1406, 0.0
        %v1441 = vrot.slane %v1440, 4
        %v1442 = vadd.f32 %v1440, %v1441
        %v1443 = vrot.slane %v1442, 2
        %v1444 = vadd.f32 %v1442, %v1443
        %v1445 = vrot.slane %v1444, 1
        %v1446 = vadd.f32 %v1444, %v1445
        %v1447 = vsel %vm662, %v1407, 0.0
        %v1448 = vrot.slane %v1447, 4
        %v1449 = vadd.f32 %v1447, %v1448
        %v1450 = vrot.slane %v1449, 2
        %v1451 = vadd.f32 %v1449, %v1450
        %v1452 = vrot.slane %v1451, 1
        %v1453 = vadd.f32 %v1451, %v1452
        %v1454 = vsel %vm662, %v1408, 0.0
        %v1455 = vrot.slane %v1454, 4
        %v1456 = vadd.f32 %v1454, %v1455
        %v1457 = vrot.slane %v1456, 2
        %v1458 = vadd.f32 %v1456, %v1457
        %v1459 = vrot.slane %v1458, 1
        %v1460 = vadd.f32 %v1458, %v1459
        %v1461 = vsel %vm662, %v1409, 0.0
        %v1462 = vrot.slane %v1461, 4
        %v1463 = vadd.f32 %v1461, %v1462
        %v1464 = vrot.slane %v1463, 2
        %v1465 = vadd.f32 %v1463, %v1464
        %v1466 = vrot.slane %v1465, 1
        %v1467 = vadd.f32 %v1465, %v1466
        %v1468 = vsel %vm662, %v1410, 0.0
        %v1469 = vrot.slane %v1468, 4
        %v1470 = vadd.f32 %v1468, %v1469
        %v1471 = vrot.slane %v1470, 2
        %v1472 = vadd.f32 %v1470, %v1471
        %v1473 = vrot.slane %v1472, 1
        %v1474 = vadd.f32 %v1472, %v1473
        %v1475 = vsel %vm662, %v1411, 0.0
        %v1476 = vrot.slane %v1475, 4
        %v1477 = vadd.f32 %v1475, %v1476
        %v1478 = vrot.slane %v1477, 2
        %v1479 = vadd.f32 %v1477, %v1478
        %v1480 = vrot.slane %v1479, 1
        %v1481 = vadd.f32 %v1479, %v1480
        %v1482 = vsel %vm662, %v1412, 0.0
        %v1483 = vrot.slane %v1482, 4
        %v1484 = vadd.f32 %v1482, %v1483
        %v1485 = vrot.slane %v1484, 2
        %v1486 = vadd.f32 %v1484, %v1485
        %v1487 = vrot.slane %v1486, 1
        %v1488 = vadd.f32 %v1486, %v1487
        %v1489 = vsel %vm662, %v1413, 0.0
        %v1490 = vrot.slane %v1489, 4
        %v1491 = vadd.f32 %v1489, %v1490
        %v1492 = vrot.slane %v1491, 2
        %v1493 = vadd.f32 %v1491, %v1492
        %v1494 = vrot.slane %v1493, 1
        %v1495 = vadd.f32 %v1493, %v1494
        %v1496 = vsel %vm662, %v1414, 0.0
        %v1497 = vrot.slane %v1496, 4
        %v1498 = vadd.f32 %v1496, %v1497
        %v1499 = vrot.slane %v1498, 2
        %v1500 = vadd.f32 %v1498, %v1499
        %v1501 = vrot.slane %v1500, 1
        %v1502 = vadd.f32 %v1500, %v1501
        %v1503 = vsel %vm662, %v1415, 0.0
        %v1504 = vrot.slane %v1503, 4
        %v1505 = vadd.f32 %v1503, %v1504
        %v1506 = vrot.slane %v1505, 2
        %v1507 = vadd.f32 %v1505, %v1506
        %v1508 = vrot.slane %v1507, 1
        %v1509 = vadd.f32 %v1507, %v1508
        %v1510 = vsel %vm662, %v1416, 0.0
        %v1511 = vrot.slane %v1510, 4
        %v1512 = vadd.f32 %v1510, %v1511
        %v1513 = vrot.slane %v1512, 2
        %v1514 = vadd.f32 %v1512, %v1513
        %v1515 = vrot.slane %v1514, 1
        %v1516 = vadd.f32 %v1514, %v1515
        %v1517 = vsel %vm662, %v1417, 0.0
        %v1518 = vrot.slane %v1517, 4
        %v1519 = vadd.f32 %v1517, %v1518
        %v1520 = vrot.slane %v1519, 2
        %v1521 = vadd.f32 %v1519, %v1520
        %v1522 = vrot.slane %v1521, 1
        %v1523 = vadd.f32 %v1521, %v1522
        %v1524 = vsel %vm662, %v1418, 0.0
        %v1525 = vrot.slane %v1524, 4
        %v1526 = vadd.f32 %v1524, %v1525
        %v1527 = vrot.slane %v1526, 2
        %v1528 = vadd.f32 %v1526, %v1527
        %v1529 = vrot.slane %v1528, 1
        %v1530 = vadd.f32 %v1528, %v1529
        %v1531 = vld [vmem:[#allocation10] sm:$0xff]
        %v1532 = vld [vmem:[#allocation10 + $0x8] sm:$0xff]
        %v1533 = vld [vmem:[#allocation10 + $0x10] sm:$0xff]
        %v1534 = vld [vmem:[#allocation10 + $0x18] sm:$0xff]
        %v1535 = vld [vmem:[%s8] sm:$0x1]
        %v1537 = vlaneseq
        %v1538 = vshrl.u32 %v1537, 7
        %v1539 = vsub.s32 0, %v1538
        %v1540 = vrot.slane %v1535, %v1539
        %vm1558 = vcmask 1041409
        %v1559 = vsel %vm1558, %v1432, %v1425
        %vm1560 = vcmask 1042434
        %v1561 = vsel %vm1560, %v1439, %v1559
        %vm1562 = vcmask 1043459
        %v1563 = vsel %vm1562, %v1446, %v1561
        %vm1564 = vcmask 1044484
        %v1565 = vsel %vm1564, %v1453, %v1563
        %vm1566 = vcmask 1045509
        %v1567 = vsel %vm1566, %v1460, %v1565
        %vm1568 = vcmask 1046534
        %v1569 = vsel %vm1568, %v1467, %v1567
        %vm1570 = vcmask 1047559
        %v1571 = vsel %vm1570, %v1474, %v1569
        %v1572 = vsel %vm1558, %v1488, %v1481
        %v1573 = vsel %vm1560, %v1495, %v1572
        %v1574 = vsel %vm1562, %v1502, %v1573
        %v1575 = vsel %vm1564, %v1509, %v1574
        %v1576 = vsel %vm1566, %v1516, %v1575
        %v1577 = vsel %vm1568, %v1523, %v1576
        %v1578 = vsel %vm1570, %v1530, %v1577
        %v1579 = vsel %vm662, %v1571, 0
        %v1581 = vsel %vm662, %v1578, 0
        %1583 = vmatprep.subr.mxu0 0.0
        %1584 = vmatpush1.msra.mxu0 0.0
        %1585 = vmatprep.subr.mxu0 0.0
        %1586 = vmatpush1.msra.mxu0 0.0
        %1587 = vmatprep.subr.mxu0 0.0
        %1588 = vmatpush1.msra.mxu0 0.0
        %1589 = vmatprep.subr.mxu0 0.0
        %1590 = vmatpush1.msra.mxu0 0.0
        %1591 = vmatprep.subr.mxu0 0.0
        %1592 = vmatpush1.msra.mxu0 0.0
        %1593 = vmatprep.subr.mxu0 0.0
        %1594 = vmatpush1.msra.mxu0 0.0
        %1595 = vmatprep.subr.mxu0 0.0
        %1596 = vmatpush1.msra.mxu0 0.0
        %1597 = vmatprep.subr.mxu0 0.0
        %1598 = vmatpush1.msra.mxu0 0.0
        %1599 = vmatprep.subr.mxu0 0.0
        %1600 = vmatpush1.msra.mxu0 0.0
        %1601 = vmatprep.subr.mxu0 0.0
        %1602 = vmatpush1.msra.mxu0 0.0
        %1603 = vmatprep.subr.mxu0 0.0
        %1604 = vmatpush1.msra.mxu0 0.0
        %1605 = vmatprep.subr.mxu0 0.0
        %1606 = vmatpush1.msra.mxu0 0.0
        %1607 = vmatprep.subr.mxu0 0.0
        %1608 = vmatpush1.msra.mxu0 %v1534
        %1609 = vmatprep.subr.mxu0 0.0
        %1610 = vmatpush1.msra.mxu0 %v1533
        %1611 = vmatprep.subr.mxu0 0.0
        %1612 = vmatpush1.msra.mxu0 %v1532
        %1613 = vmatprep.subr.mxu0 0.0
        %1614 = vmatpush1.msra.mxu0 %v1531
        %1615 = vmatprep.subr.mxu0 0.0
        %1616 = vmatpush2.msra.mxu0 0.0
        %1617 = vmatprep.subr.mxu0 0.0
        %1618 = vmatpush2.msra.mxu0 0.0
        %1619 = vmatprep.subr.mxu0 0.0
        %1620 = vmatpush2.msra.mxu0 0.0
        %1621 = vmatprep.subr.mxu0 0.0
        %1622 = vmatpush2.msra.mxu0 0.0
        %1623 = vmatprep.subr.mxu0 0.0
        %1624 = vmatpush2.msra.mxu0 0.0
        %1625 = vmatprep.subr.mxu0 0.0
        %1626 = vmatpush2.msra.mxu0 0.0
        %1627 = vmatprep.subr.mxu0 0.0
        %1628 = vmatpush2.msra.mxu0 0.0
        %1629 = vmatprep.subr.mxu0 0.0
        %1630 = vmatpush2.msra.mxu0 0.0
        %1631 = vmatprep.subr.mxu0 0.0
        %1632 = vmatpush2.msra.mxu0 0.0
        %1633 = vmatprep.subr.mxu0 0.0
        %1634 = vmatpush2.msra.mxu0 0.0
        %1635 = vmatprep.subr.mxu0 0.0
        %1636 = vmatpush2.msra.mxu0 0.0
        %1637 = vmatprep.subr.mxu0 0.0
        %1638 = vmatpush2.msra.mxu0 0.0
        %1639 = vmatprep.subr.mxu0 0.0
        %1640 = vmatpush2.msra.mxu0 0.0
        %1641 = vmatprep.subr.mxu0 0.0
        %1642 = vmatpush2.msra.mxu0 0.0
        %1643 = vmatprep.subr.mxu0 0.0
        %1644 = vmatpush2.msra.mxu0 0.0
        %1645 = vmatprep.subr.mxu0 0.0
        %1646 = vmatpush2.msra.mxu0 0.0
        %1647 = vmatprep.mubr.f32.mxu0 0.0
        %1648 = vmatmul.mubr.f32.gmra.mxu0 %v1579
        %v1649 = vpop.f32.mrf.mxu0
        %v1650 = vadd.f32 %v1540, %v1649
        %v1651 = vpop.f32.mrf.mxu0
        %1652 = vmatprep.mubr.f32.mxu0 0.0
        %1653 = vmatmul.mubr.f32.gmra.mxu0 %v1581
        %v1654 = vpop.f32.mrf.mxu0
        %v1655 = vadd.f32 %v1540, %v1654
        %v1656 = vpop.f32.mrf.mxu0
        %1657 = vdwg.mxu0
        %v1660 = vcombine.high %v1650, %v1650
        %v1662 = vunpack.c.l.s4 1966171168
        %v1663 = vunpack.c.0.s8 %v1662
        %v1664 = vlaneseq
        %v1665 = vshrl.u32 %v1664, 7
        %v1666 = vsub.s32 %v1663, %v1665
        %v1667 = vrot.slane %v1650, %v1666
        %v1669 = vunpack.c.l.s4 1966171168
        %v1670 = vunpack.c.0.s8 %v1669
        %v1671 = vlaneseq
        %v1672 = vshrl.u32 %v1671, 7
        %v1673 = vsub.s32 %v1670, %v1672
        %v1674 = vrot.slane %v1660, %v1673
        %v1675 = vcombine.high %v1667, %v1667
        %v1676 = vcombine.high %v1674, %v1674
        %v1678 = vunpack.c.l.s4 1966171168
        %v1679 = vunpack.c.0.s8 %v1678
        %v1680 = vlaneseq
        %v1681 = vshrl.u32 %v1680, 7
        %v1682 = vsub.s32 %v1679, %v1681
        %v1683 = vrot.slane %v1667, %v1682
        %v1685 = vunpack.c.l.s4 1966171168
        %v1686 = vunpack.c.0.s8 %v1685
        %v1687 = vlaneseq
        %v1688 = vshrl.u32 %v1687, 7
        %v1689 = vsub.s32 %v1686, %v1688
        %v1690 = vrot.slane %v1674, %v1689
        %v1692 = vunpack.c.l.s4 1966171168
        %v1693 = vunpack.c.0.s8 %v1692
        %v1694 = vlaneseq
        %v1695 = vshrl.u32 %v1694, 7
        %v1696 = vsub.s32 %v1693, %v1695
        %v1697 = vrot.slane %v1675, %v1696
        %v1699 = vunpack.c.l.s4 1966171168
        %v1700 = vunpack.c.0.s8 %v1699
        %v1701 = vlaneseq
        %v1702 = vshrl.u32 %v1701, 7
        %v1703 = vsub.s32 %v1700, %v1702
        %v1704 = vrot.slane %v1676, %v1703
        %v1705 = vcombine.high %v1683, %v1683
        %v1706 = vcombine.high %v1690, %v1690
        %v1707 = vcombine.high %v1697, %v1697
        %v1708 = vcombine.high %v1704, %v1704
        %v1709 = vcombine.high %v1655, %v1655
        %v1711 = vunpack.c.l.s4 1966171168
        %v1712 = vunpack.c.0.s8 %v1711
        %v1713 = vlaneseq
        %v1714 = vshrl.u32 %v1713, 7
        %v1715 = vsub.s32 %v1712, %v1714
        %v1716 = vrot.slane %v1655, %v1715
        %v1718 = vunpack.c.l.s4 1966171168
        %v1719 = vunpack.c.0.s8 %v1718
        %v1720 = vlaneseq
        %v1721 = vshrl.u32 %v1720, 7
        %v1722 = vsub.s32 %v1719, %v1721
        %v1723 = vrot.slane %v1709, %v1722
        %v1724 = vcombine.high %v1716, %v1716
        %v1725 = vcombine.high %v1723, %v1723
        %v1727 = vunpack.c.l.s4 1966171168
        %v1728 = vunpack.c.0.s8 %v1727
        %v1729 = vlaneseq
        %v1730 = vshrl.u32 %v1729, 7
        %v1731 = vsub.s32 %v1728, %v1730
        %v1732 = vrot.slane %v1716, %v1731
        %v1734 = vunpack.c.l.s4 1966171168
        %v1735 = vunpack.c.0.s8 %v1734
        %v1736 = vlaneseq
        %v1737 = vshrl.u32 %v1736, 7
        %v1738 = vsub.s32 %v1735, %v1737
        %v1739 = vrot.slane %v1723, %v1738
        %v1741 = vunpack.c.l.s4 1966171168
        %v1742 = vunpack.c.0.s8 %v1741
        %v1743 = vlaneseq
        %v1744 = vshrl.u32 %v1743, 7
        %v1745 = vsub.s32 %v1742, %v1744
        %v1746 = vrot.slane %v1724, %v1745
        %v1748 = vunpack.c.l.s4 1966171168
        %v1749 = vunpack.c.0.s8 %v1748
        %v1750 = vlaneseq
        %v1751 = vshrl.u32 %v1750, 7
        %v1752 = vsub.s32 %v1749, %v1751
        %v1753 = vrot.slane %v1725, %v1752
        %v1754 = vcombine.high %v1732, %v1732
        %v1755 = vcombine.high %v1739, %v1739
        %v1756 = vcombine.high %v1746, %v1746
        %v1757 = vcombine.high %v1753, %v1753
        %v1758 = vlaneseq
        %v1759 = vshrl.u32 %v1758, 7
        %v1760 = vsub.s32 0, %v1759
        %v1761 = vrot.slane %v1683, %v1760
        %v1762 = vlaneseq
        %v1763 = vshrl.u32 %v1762, 7
        %v1764 = vsub.s32 0, %v1763
        %v1765 = vrot.slane %v1697, %v1764
        %v1766 = vlaneseq
        %v1767 = vshrl.u32 %v1766, 7
        %v1768 = vsub.s32 0, %v1767
        %v1769 = vrot.slane %v1705, %v1768
        %v1770 = vlaneseq
        %v1771 = vshrl.u32 %v1770, 7
        %v1772 = vsub.s32 0, %v1771
        %v1773 = vrot.slane %v1707, %v1772
        %v1774 = vlaneseq
        %v1775 = vshrl.u32 %v1774, 7
        %v1776 = vsub.s32 0, %v1775
        %v1777 = vrot.slane %v1690, %v1776
        %v1778 = vlaneseq
        %v1779 = vshrl.u32 %v1778, 7
        %v1780 = vsub.s32 0, %v1779
        %v1781 = vrot.slane %v1704, %v1780
        %v1782 = vlaneseq
        %v1783 = vshrl.u32 %v1782, 7
        %v1784 = vsub.s32 0, %v1783
        %v1785 = vrot.slane %v1706, %v1784
        %v1786 = vlaneseq
        %v1787 = vshrl.u32 %v1786, 7
        %v1788 = vsub.s32 0, %v1787
        %v1789 = vrot.slane %v1708, %v1788
        %v1790 = vlaneseq
        %v1791 = vshrl.u32 %v1790, 7
        %v1792 = vsub.s32 0, %v1791
        %v1793 = vrot.slane %v1732, %v1792
        %v1794 = vlaneseq
        %v1795 = vshrl.u32 %v1794, 7
        %v1796 = vsub.s32 0, %v1795
        %v1797 = vrot.slane %v1746, %v1796
        %v1798 = vlaneseq
        %v1799 = vshrl.u32 %v1798, 7
        %v1800 = vsub.s32 0, %v1799
        %v1801 = vrot.slane %v1754, %v1800
        %v1802 = vlaneseq
        %v1803 = vshrl.u32 %v1802, 7
        %v1804 = vsub.s32 0, %v1803
        %v1805 = vrot.slane %v1756, %v1804
        %v1806 = vlaneseq
        %v1807 = vshrl.u32 %v1806, 7
        %v1808 = vsub.s32 0, %v1807
        %v1809 = vrot.slane %v1739, %v1808
        %v1810 = vlaneseq
        %v1811 = vshrl.u32 %v1810, 7
        %v1812 = vsub.s32 0, %v1811
        %v1813 = vrot.slane %v1753, %v1812
        %v1814 = vlaneseq
        %v1815 = vshrl.u32 %v1814, 7
        %v1816 = vsub.s32 0, %v1815
        %v1817 = vrot.slane %v1755, %v1816
        %v1818 = vlaneseq
        %v1819 = vshrl.u32 %v1818, 7
        %v1820 = vsub.s32 0, %v1819
        %v1821 = vrot.slane %v1757, %v1820
        %v1838 = vadd.f32 %v635, %v1761
        %v1839 = vadd.f32 %v636, %v1765
        %v1840 = vadd.f32 %v637, %v1769
        %v1841 = vadd.f32 %v638, %v1773
        %v1842 = vadd.f32 %v639, %v1777
        %v1843 = vadd.f32 %v640, %v1781
        %v1844 = vadd.f32 %v641, %v1785
        %v1845 = vadd.f32 %v642, %v1789
        %v1846 = vadd.f32 %v643, %v1793
        %v1847 = vadd.f32 %v644, %v1797
        %v1848 = vadd.f32 %v645, %v1801
        %v1849 = vadd.f32 %v646, %v1805
        %v1850 = vadd.f32 %v647, %v1809
        %v1851 = vadd.f32 %v648, %v1813
        %v1852 = vadd.f32 %v649, %v1817
        %v1853 = vadd.f32 %v650, %v1821
        %vm1854 = vcmp.ge.f32.partialorder %v1838, 0.0
        %vm1855 = vcmp.ge.f32.partialorder %v1839, 0.0
        %vm1856 = vcmp.ge.f32.partialorder %v1840, 0.0
        %vm1857 = vcmp.ge.f32.partialorder %v1841, 0.0
        %vm1858 = vcmp.ge.f32.partialorder %v1842, 0.0
        %vm1859 = vcmp.ge.f32.partialorder %v1843, 0.0
        %vm1860 = vcmp.ge.f32.partialorder %v1844, 0.0
        %vm1861 = vcmp.ge.f32.partialorder %v1845, 0.0
        %vm1862 = vcmp.ge.f32.partialorder %v1846, 0.0
        %vm1863 = vcmp.ge.f32.partialorder %v1847, 0.0
        %vm1864 = vcmp.ge.f32.partialorder %v1848, 0.0
        %vm1865 = vcmp.ge.f32.partialorder %v1849, 0.0
        %vm1866 = vcmp.ge.f32.partialorder %v1850, 0.0
        %vm1867 = vcmp.ge.f32.partialorder %v1851, 0.0
        %vm1868 = vcmp.ge.f32.partialorder %v1852, 0.0
        %vm1869 = vcmp.ge.f32.partialorder %v1853, 0.0
        %v1870 = vmul.f32 %v1838, 0.01
        %v1871 = vmul.f32 %v1839, 0.01
        %v1872 = vmul.f32 %v1840, 0.01
        %v1873 = vmul.f32 %v1841, 0.01
        %v1874 = vmul.f32 %v1842, 0.01
        %v1875 = vmul.f32 %v1843, 0.01
        %v1876 = vmul.f32 %v1844, 0.01
        %v1877 = vmul.f32 %v1845, 0.01
        %v1878 = vmul.f32 %v1846, 0.01
        %v1879 = vmul.f32 %v1847, 0.01
        %v1880 = vmul.f32 %v1848, 0.01
        %v1881 = vmul.f32 %v1849, 0.01
        %v1882 = vmul.f32 %v1850, 0.01
        %v1883 = vmul.f32 %v1851, 0.01
        %v1884 = vmul.f32 %v1852, 0.01
        %v1885 = vmul.f32 %v1853, 0.01
        %v1886 = vsel %vm1854, %v1838, %v1870
        %v1887 = vsel %vm1855, %v1839, %v1871
        %v1888 = vsel %vm1856, %v1840, %v1872
        %v1889 = vsel %vm1857, %v1841, %v1873
        %v1890 = vsel %vm1858, %v1842, %v1874
        %v1891 = vsel %vm1859, %v1843, %v1875
        %v1892 = vsel %vm1860, %v1844, %v1876
        %v1893 = vsel %vm1861, %v1845, %v1877
        %v1894 = vsel %vm1862, %v1846, %v1878
        %v1895 = vsel %vm1863, %v1847, %v1879
        %v1896 = vsel %vm1864, %v1848, %v1880
        %v1897 = vsel %vm1865, %v1849, %v1881
        %v1898 = vsel %vm1866, %v1850, %v1882
        %v1899 = vsel %vm1867, %v1851, %v1883
        %v1900 = vsel %vm1868, %v1852, %v1884
        %v1901 = vsel %vm1869, %v1853, %v1885
        %v1902 = vcombine.low %v1886, %v1888
        %v1903 = vcombine.high %v1886, %v1888
        %v1905 = vunpack.c.l.s4 1983009808
        %v1906 = vunpack.c.0.s8 %v1905
        %v1907 = vlaneseq
        %v1908 = vshrl.u32 %v1907, 7
        %v1909 = vsub.s32 %v1906, %v1908
        %v1910 = vrot.slane %v1902, %v1909
        %v1912 = vunpack.c.l.s4 1983009808
        %v1913 = vunpack.c.0.s8 %v1912
        %v1914 = vlaneseq
        %v1915 = vshrl.u32 %v1914, 7
        %v1916 = vsub.s32 %v1913, %v1915
        %v1917 = vrot.slane %v1903, %v1916
        %v1918 = vcombine.low %v1887, %v1889
        %v1919 = vcombine.high %v1887, %v1889
        %v1921 = vunpack.c.l.s4 1983009808
        %v1922 = vunpack.c.0.s8 %v1921
        %v1923 = vlaneseq
        %v1924 = vshrl.u32 %v1923, 7
        %v1925 = vsub.s32 %v1922, %v1924
        %v1926 = vrot.slane %v1918, %v1925
        %v1928 = vunpack.c.l.s4 1983009808
        %v1929 = vunpack.c.0.s8 %v1928
        %v1930 = vlaneseq
        %v1931 = vshrl.u32 %v1930, 7
        %v1932 = vsub.s32 %v1929, %v1931
        %v1933 = vrot.slane %v1919, %v1932
        %v1934 = vcombine.low %v1890, %v1892
        %v1935 = vcombine.high %v1890, %v1892
        %v1937 = vunpack.c.l.s4 1983009808
        %v1938 = vunpack.c.0.s8 %v1937
        %v1939 = vlaneseq
        %v1940 = vshrl.u32 %v1939, 7
        %v1941 = vsub.s32 %v1938, %v1940
        %v1942 = vrot.slane %v1934, %v1941
        %v1944 = vunpack.c.l.s4 1983009808
        %v1945 = vunpack.c.0.s8 %v1944
        %v1946 = vlaneseq
        %v1947 = vshrl.u32 %v1946, 7
        %v1948 = vsub.s32 %v1945, %v1947
        %v1949 = vrot.slane %v1935, %v1948
        %v1950 = vcombine.low %v1891, %v1893
        %v1951 = vcombine.high %v1891, %v1893
        %v1953 = vunpack.c.l.s4 1983009808
        %v1954 = vunpack.c.0.s8 %v1953
        %v1955 = vlaneseq
        %v1956 = vshrl.u32 %v1955, 7
        %v1957 = vsub.s32 %v1954, %v1956
        %v1958 = vrot.slane %v1950, %v1957
        %v1960 = vunpack.c.l.s4 1983009808
        %v1961 = vunpack.c.0.s8 %v1960
        %v1962 = vlaneseq
        %v1963 = vshrl.u32 %v1962, 7
        %v1964 = vsub.s32 %v1961, %v1963
        %v1965 = vrot.slane %v1951, %v1964
        %v1966 = vcombine.low %v1910, %v1926
        %v1967 = vcombine.high %v1910, %v1926
        %v1969 = vunpack.c.l.s4 1934713408
        %v1970 = vunpack.c.0.s8 %v1969
        %v1971 = vlaneseq
        %v1972 = vshrl.u32 %v1971, 7
        %v1973 = vsub.s32 %v1970, %v1972
        %v1974 = vrot.slane %v1966, %v1973
        %v1976 = vunpack.c.l.s4 1934713408
        %v1977 = vunpack.c.0.s8 %v1976
        %v1978 = vlaneseq
        %v1979 = vshrl.u32 %v1978, 7
        %v1980 = vsub.s32 %v1977, %v1979
        %v1981 = vrot.slane %v1967, %v1980
        %v1982 = vcombine.low %v1917, %v1933
        %v1983 = vcombine.high %v1917, %v1933
        %v1985 = vunpack.c.l.s4 1934713408
        %v1986 = vunpack.c.0.s8 %v1985
        %v1987 = vlaneseq
        %v1988 = vshrl.u32 %v1987, 7
        %v1989 = vsub.s32 %v1986, %v1988
        %v1990 = vrot.slane %v1982, %v1989
        %v1992 = vunpack.c.l.s4 1934713408
        %v1993 = vunpack.c.0.s8 %v1992
        %v1994 = vlaneseq
        %v1995 = vshrl.u32 %v1994, 7
        %v1996 = vsub.s32 %v1993, %v1995
        %v1997 = vrot.slane %v1983, %v1996
        %v1998 = vcombine.low %v1942, %v1958
        %v1999 = vcombine.high %v1942, %v1958
        %v2001 = vunpack.c.l.s4 1934713408
        %v2002 = vunpack.c.0.s8 %v2001
        %v2003 = vlaneseq
        %v2004 = vshrl.u32 %v2003, 7
        %v2005 = vsub.s32 %v2002, %v2004
        %v2006 = vrot.slane %v1998, %v2005
        %v2008 = vunpack.c.l.s4 1934713408
        %v2009 = vunpack.c.0.s8 %v2008
        %v2010 = vlaneseq
        %v2011 = vshrl.u32 %v2010, 7
        %v2012 = vsub.s32 %v2009, %v2011
        %v2013 = vrot.slane %v1999, %v2012
        %v2014 = vcombine.low %v1949, %v1965
        %v2015 = vcombine.high %v1949, %v1965
        %v2017 = vunpack.c.l.s4 1934713408
        %v2018 = vunpack.c.0.s8 %v2017
        %v2019 = vlaneseq
        %v2020 = vshrl.u32 %v2019, 7
        %v2021 = vsub.s32 %v2018, %v2020
        %v2022 = vrot.slane %v2014, %v2021
        %v2024 = vunpack.c.l.s4 1934713408
        %v2025 = vunpack.c.0.s8 %v2024
        %v2026 = vlaneseq
        %v2027 = vshrl.u32 %v2026, 7
        %v2028 = vsub.s32 %v2025, %v2027
        %v2029 = vrot.slane %v2015, %v2028
        %v2030 = vcombine.low %v1974, %v2006
        %v2031 = vcombine.high %v1974, %v2006
        %v2032 = vcombine.low %v1981, %v2013
        %v2033 = vcombine.high %v1981, %v2013
        %v2034 = vcombine.low %v1990, %v2022
        %v2035 = vcombine.high %v1990, %v2022
        %v2036 = vcombine.low %v1997, %v2029
        %v2037 = vcombine.high %v1997, %v2029
        %v2038 = vcombine.low %v1894, %v1896
        %v2039 = vcombine.high %v1894, %v1896
        %v2041 = vunpack.c.l.s4 1983009808
        %v2042 = vunpack.c.0.s8 %v2041
        %v2043 = vlaneseq
        %v2044 = vshrl.u32 %v2043, 7
        %v2045 = vsub.s32 %v2042, %v2044
        %v2046 = vrot.slane %v2038, %v2045
        %v2048 = vunpack.c.l.s4 1983009808
        %v2049 = vunpack.c.0.s8 %v2048
        %v2050 = vlaneseq
        %v2051 = vshrl.u32 %v2050, 7
        %v2052 = vsub.s32 %v2049, %v2051
        %v2053 = vrot.slane %v2039, %v2052
        %v2054 = vcombine.low %v1895, %v1897
        %v2055 = vcombine.high %v1895, %v1897
        %v2057 = vunpack.c.l.s4 1983009808
        %v2058 = vunpack.c.0.s8 %v2057
        %v2059 = vlaneseq
        %v2060 = vshrl.u32 %v2059, 7
        %v2061 = vsub.s32 %v2058, %v2060
        %v2062 = vrot.slane %v2054, %v2061
        %v2064 = vunpack.c.l.s4 1983009808
        %v2065 = vunpack.c.0.s8 %v2064
        %v2066 = vlaneseq
        %v2067 = vshrl.u32 %v2066, 7
        %v2068 = vsub.s32 %v2065, %v2067
        %v2069 = vrot.slane %v2055, %v2068
        %v2070 = vcombine.low %v1898, %v1900
        %v2071 = vcombine.high %v1898, %v1900
        %v2073 = vunpack.c.l.s4 1983009808
        %v2074 = vunpack.c.0.s8 %v2073
        %v2075 = vlaneseq
        %v2076 = vshrl.u32 %v2075, 7
        %v2077 = vsub.s32 %v2074, %v2076
        %v2078 = vrot.slane %v2070, %v2077
        %v2080 = vunpack.c.l.s4 1983009808
        %v2081 = vunpack.c.0.s8 %v2080
        %v2082 = vlaneseq
        %v2083 = vshrl.u32 %v2082, 7
        %v2084 = vsub.s32 %v2081, %v2083
        %v2085 = vrot.slane %v2071, %v2084
        %v2086 = vcombine.low %v1899, %v1901
        %v2087 = vcombine.high %v1899, %v1901
        %v2089 = vunpack.c.l.s4 1983009808
        %v2090 = vunpack.c.0.s8 %v2089
        %v2091 = vlaneseq
        %v2092 = vshrl.u32 %v2091, 7
        %v2093 = vsub.s32 %v2090, %v2092
        %v2094 = vrot.slane %v2086, %v2093
        %v2096 = vunpack.c.l.s4 1983009808
        %v2097 = vunpack.c.0.s8 %v2096
        %v2098 = vlaneseq
        %v2099 = vshrl.u32 %v2098, 7
        %v2100 = vsub.s32 %v2097, %v2099
        %v2101 = vrot.slane %v2087, %v2100
        %v2102 = vcombine.low %v2046, %v2062
        %v2103 = vcombine.high %v2046, %v2062
        %v2105 = vunpack.c.l.s4 1934713408
        %v2106 = vunpack.c.0.s8 %v2105
        %v2107 = vlaneseq
        %v2108 = vshrl.u32 %v2107, 7
        %v2109 = vsub.s32 %v2106, %v2108
        %v2110 = vrot.slane %v2102, %v2109
        %v2112 = vunpack.c.l.s4 1934713408
        %v2113 = vunpack.c.0.s8 %v2112
        %v2114 = vlaneseq
        %v2115 = vshrl.u32 %v2114, 7
        %v2116 = vsub.s32 %v2113, %v2115
        %v2117 = vrot.slane %v2103, %v2116
        %v2118 = vcombine.low %v2053, %v2069
        %v2119 = vcombine.high %v2053, %v2069
        %v2121 = vunpack.c.l.s4 1934713408
        %v2122 = vunpack.c.0.s8 %v2121
        %v2123 = vlaneseq
        %v2124 = vshrl.u32 %v2123, 7
        %v2125 = vsub.s32 %v2122, %v2124
        %v2126 = vrot.slane %v2118, %v2125
        %v2128 = vunpack.c.l.s4 1934713408
        %v2129 = vunpack.c.0.s8 %v2128
        %v2130 = vlaneseq
        %v2131 = vshrl.u32 %v2130, 7
        %v2132 = vsub.s32 %v2129, %v2131
        %v2133 = vrot.slane %v2119, %v2132
        %v2134 = vcombine.low %v2078, %v2094
        %v2135 = vcombine.high %v2078, %v2094
        %v2137 = vunpack.c.l.s4 1934713408
        %v2138 = vunpack.c.0.s8 %v2137
        %v2139 = vlaneseq
        %v2140 = vshrl.u32 %v2139, 7
        %v2141 = vsub.s32 %v2138, %v2140
        %v2142 = vrot.slane %v2134, %v2141
        %v2144 = vunpack.c.l.s4 1934713408
        %v2145 = vunpack.c.0.s8 %v2144
        %v2146 = vlaneseq
        %v2147 = vshrl.u32 %v2146, 7
        %v2148 = vsub.s32 %v2145, %v2147
        %v2149 = vrot.slane %v2135, %v2148
        %v2150 = vcombine.low %v2085, %v2101
        %v2151 = vcombine.high %v2085, %v2101
        %v2153 = vunpack.c.l.s4 1934713408
        %v2154 = vunpack.c.0.s8 %v2153
        %v2155 = vlaneseq
        %v2156 = vshrl.u32 %v2155, 7
        %v2157 = vsub.s32 %v2154, %v2156
        %v2158 = vrot.slane %v2150, %v2157
        %v2160 = vunpack.c.l.s4 1934713408
        %v2161 = vunpack.c.0.s8 %v2160
        %v2162 = vlaneseq
        %v2163 = vshrl.u32 %v2162, 7
        %v2164 = vsub.s32 %v2161, %v2163
        %v2165 = vrot.slane %v2151, %v2164
        %v2166 = vcombine.low %v2110, %v2142
        %v2167 = vcombine.high %v2110, %v2142
        %v2168 = vcombine.low %v2117, %v2149
        %v2169 = vcombine.high %v2117, %v2149
        %v2170 = vcombine.low %v2126, %v2158
        %v2171 = vcombine.high %v2126, %v2158
        %v2172 = vcombine.low %v2133, %v2165
        %v2173 = vcombine.high %v2133, %v2165
        %2176 = vrot.lane.b32.xlu0 %v2031, 32
        %v2177 = vpop.permute.xlu0 %2176
        %2178 = vrot.lane.b32.xlu0 %v2167, 32
        %v2179 = vpop.permute.xlu0 %2178
        %2184 = vrot.lane.b32.xlu0 %v2032, 64
        %v2185 = vpop.permute.xlu0 %2184
        %2186 = vrot.lane.b32.xlu0 %v2168, 64
        %v2187 = vpop.permute.xlu0 %2186
        %2192 = vrot.lane.b32.xlu0 %v2033, 96
        %v2193 = vpop.permute.xlu0 %2192
        %2194 = vrot.lane.b32.xlu0 %v2169, 96
        %v2195 = vpop.permute.xlu0 %2194
        %2200 = vrot.lane.b32.xlu0 %v2035, 32
        %v2201 = vpop.permute.xlu0 %2200
        %2202 = vrot.lane.b32.xlu0 %v2171, 32
        %v2203 = vpop.permute.xlu0 %2202
        %2208 = vrot.lane.b32.xlu0 %v2036, 64
        %v2209 = vpop.permute.xlu0 %2208
        %2210 = vrot.lane.b32.xlu0 %v2172, 64
        %v2211 = vpop.permute.xlu0 %2210
        %2216 = vrot.lane.b32.xlu0 %v2037, 96
        %v2217 = vpop.permute.xlu0 %2216
        %2218 = vrot.lane.b32.xlu0 %v2173, 96
        %v2219 = vpop.permute.xlu0 %2218
        %v2222 = vsel %vm662, %v2030, %v2177
        %v2223 = vsel %vm662, %v2166, %v2179
        %vm2224 = vcmask 523264
        %v2225 = vsel %vm2224, %v2222, %v2185
        %v2226 = vsel %vm2224, %v2223, %v2187
        %vm2227 = vcmask 785408
        %v2228 = vsel %vm2227, %v2225, %v2193
        %v2229 = vsel %vm2227, %v2226, %v2195
        %v2230 = vsel %vm662, %v2034, %v2201
        %v2231 = vsel %vm662, %v2170, %v2203
        %v2232 = vsel %vm2224, %v2230, %v2209
        %v2233 = vsel %vm2224, %v2231, %v2211
        %v2234 = vsel %vm2227, %v2232, %v2217
        %v2235 = vsel %vm2227, %v2233, %v2219
        %2236 = vst [vmem:[%s433] sm:$0xff] %v2228
        %2237 = vst [vmem:[%s433 + $0x8] sm:$0xff] %v2234
        %2238 = vst [vmem:[%s433 + $0x10] sm:$0xff] %v2229
        %2239 = vst [vmem:[%s433 + $0x18] sm:$0xff] %v2235
        %s2240 = sand.u32 %s237, 1
        %s2241 = scalar_lea.sflag [#allocation4], %s2240
        %s2242 = sand.u32 %s237, 1
        %s2243 = smul.addr %s2242, 32
        %s2244 = scalar_lea.vmem [#allocation11], %s2243
        // Predicated region
        $region77: #{tpu_custom_call.1} parent=55 // pred_check
          %p2245 = pneg %p247
        $region78: #{tpu_custom_call.1} parent=55 // pred_check_branch
          %2247 = sbr.rel (%p2245) target = $region80
        $region79: #{tpu_custom_call.1} parent=55 // pred_region
          %s2248 = smul.u32 2, %s30
          %s2250 = ssub.s32 512, 512
          %2251 = vsyncadd %s2241, %s2250
          %s2252 = smul.addr %s2248, 2
          %s2253 = smul.addr %s2252, 128
          %s2254 = scalar_lea.hbm %s9, %s2253
          %s2255 = sshll.u32 %s2244, 4
          %s2256 = int_to_ptr.vmem [resolvable:$true] %s2255
          %2261 = dma.vmem_to_hbm [thread:$0]  %s2256, 512, %s2254, %s2241, 256, 256, 16
        $region80: #{tpu_custom_call.1} parent=55 // pred_fallthru
          _
      $region56: #{tpu_custom_call.1} parent=5 // pred_fallthru
        _
      %p2262 = scmp.le.s32.totalorder 2, %s25
      // Predicated region
      $region81: #{tpu_custom_call.1} parent=5 // pred_check
        %p2263 = pneg %p2262
      $region82: #{tpu_custom_call.1} parent=5 // pred_check_branch
        %2265 = sbr.rel (%p2263) target = $region84
      $region83: #{tpu_custom_call.1} parent=5 // pred_region
        %s2266 = ssub.s32 %s25, 2
        // Predicated region
        $region85: #{tpu_custom_call.1} parent=83 // pred_check
          %p2267 = pneg %p253
        $region86: #{tpu_custom_call.1} parent=83 // pred_check_branch
          %2269 = sbr.rel (%p2267) target = $region88
        $region87: #{tpu_custom_call.1} parent=83 // pred_region
          %s2270 = sand.u32 %s238, 1
          %s2271 = scalar_lea.sflag [#allocation4], %s2270
          %s2272 = sand.u32 %s238, 1
          %s2273 = smul.addr %s2272, 32
          %s2274 = scalar_lea.vmem [#allocation11], %s2273
          %2275 = dma.done %s2271, 512
        $region88: #{tpu_custom_call.1} parent=83 // pred_fallthru
          _
      $region84: #{tpu_custom_call.1} parent=5 // pred_fallthru
        _
    $region6: #{tpu_custom_call.1} parent=1 // loop_footer
      %s29 = sadd.s32 1, %s25
    $region7: #{tpu_custom_call.1} parent=1 // loop_footer_branch
      %24 = sbr.rel target = $region3
    $region8: #{tpu_custom_call.1} parent=1 // loop_exit
      _
    %2276 = vsyncpa [#allocation3], 1
    %s2277 = scalar_lea.sflag [#allocation3], 1
    %2278 = vsyncpa %s2277, 1
    %2279 = vsyncpa [#allocation6], 1
    %s2280 = scalar_lea.sflag [#allocation6], 1
    %2281 = vsyncpa %s2280, 1
    %2282 = vsyncpa [#allocation9], 1
    %2283 = vsyncpa [#allocation4], 1
    %s2284 = scalar_lea.sflag [#allocation4], 1
    %2285 = vsyncpa %s2284, 1

</llo_original>
